<compile_context>
chip_gen: v7x
topology: tpu7x:2x2x1
jax: 0.10.0
libtpu: 0.0.40
codegen_flags: <defaults>
</compile_context>

<pallas_src>
import functools
import math

import numpy as np
import jax
import jax.numpy as jnp
from jax.experimental import pallas as pl
from jax.experimental.pallas import tpu as pltpu


# ----------------------------------------------------------------------------
# Deterministic buffer construction (matches the PyTorch module exactly)
# ----------------------------------------------------------------------------
def get_freq_indices(method):
    num_freq = int(method[3:])
    if 'top' in method:
        all_x = [0, 0, 6, 0, 0, 1, 1, 4, 5, 1, 3, 0, 0, 0, 3, 2, 4, 6, 3, 5, 5, 2, 6, 5, 5, 3, 3, 4, 2, 2, 6, 1]
        all_y = [0, 1, 0, 5, 2, 0, 2, 0, 0, 6, 0, 4, 6, 3, 5, 2, 6, 3, 3, 3, 5, 1, 1, 2, 4, 2, 1, 1, 3, 0, 5, 3]
    elif 'low' in method:
        all_x = [0, 0, 1, 1, 0, 2, 2, 1, 2, 0, 3, 4, 0, 1, 3, 0, 1, 2, 3, 4, 5, 0, 1, 2, 3, 4, 5, 6, 1, 2, 3, 4]
        all_y = [0, 1, 0, 1, 2, 0, 1, 2, 2, 3, 0, 0, 4, 3, 1, 5, 4, 3, 2, 1, 0, 6, 5, 4, 3, 2, 1, 0, 6, 5, 4, 3]
    elif 'bot' in method:
        all_x = [6, 1, 3, 3, 2, 4, 1, 2, 4, 4, 5, 1, 4, 6, 2, 5, 6, 1, 6, 2, 2, 4, 3, 3, 5, 5, 6, 2, 5, 5, 3, 6]
        all_y = [6, 4, 4, 6, 6, 3, 1, 4, 4, 5, 6, 5, 2, 2, 5, 1, 4, 3, 5, 0, 3, 1, 1, 2, 4, 2, 1, 1, 5, 3, 3, 3]
    else:
        raise NotImplementedError
    return all_x[:num_freq], all_y[:num_freq]


def _build_filter(pos, freq, POS):
    result = math.cos(math.pi * freq * (pos + 0.5) / POS) / math.sqrt(POS)
    return result if freq == 0 else result * math.sqrt(2)


def get_dct_filter(tile_x, tile_y, mapper_x, mapper_y, in_channels):
    f = np.zeros((in_channels, tile_x, tile_y), dtype=np.float32)
    for tx in range(tile_x):
        for ty in range(tile_y):
            f[:, tx, ty] = _build_filter(tx, mapper_x, tile_x) * _build_filter(ty, mapper_y, tile_y)
    return f


def adaptive_pool_matrix(in_size, out_size):
    """P such that (P @ v) reproduces torch adaptive_avg_pool1d windows."""
    P = np.zeros((out_size, in_size), dtype=np.float32)
    for i in range(out_size):
        start = (i * in_size) // out_size
        end = -((-(i + 1) * in_size) // out_size)  # ceil((i+1)*in/out)
        P[i, start:end] = 1.0 / (end - start)
    return P


# ----------------------------------------------------------------------------
# Pallas kernel: fused adaptive-pool + DCT weighting + reductions + fc + apply
# ----------------------------------------------------------------------------
def mfca_kernel(x_ref, p_ref, dsum_ref, dct_ref, w1t_ref, w2t_ref, out_ref, *, s_true):
    # x_ref    : (TB, C, HW)   input tile (stream dtype: f32 or bf16)
    # p_ref    : (HW, S_pad)   adaptive-avg-pool matrix, bf16, zero-padded lanes
    # dsum_ref : (C, S_pad)    sum_f dct[f]  (f32, zero-padded lanes)
    # dct_ref  : (F, C, S_pad) per-frequency DCT filters (f32, zero-padded lanes)
    # w1t_ref  : (C, Cr)       fc.0 weight (1x1 conv), transposed
    # w2t_ref  : (Cr, C)       fc.2 weight (1x1 conv), transposed
    # out_ref  : (TB, C, HW)
    tb, C, HW = x_ref.shape
    num_freq = dct_ref.shape[0]
    s_pad = p_ref.shape[1]
    inv_s = 1.0 / float(s_true)
    inv_f = 1.0 / float(num_freq)

    # Lane-validity mask for the zero-padded S columns; hoisted, reused by all
    # frequencies.  jnp.where is robust even if xp's pad lanes were nonzero.
    lane = jax.lax.broadcasted_iota(jnp.int32, (1, 1, s_pad), 2)
    valid = lane < s_true
    neg_big = jnp.float32(-3.0e38)
    pos_big = jnp.float32(3.0e38)

    x = x_ref[...]                                       # (TB, C, HW)

    # Fused adaptive average pooling as ONE batched MXU matmul:
    # (TB*C, HW) bf16 @ (HW, S_pad) bf16 -> (TB*C, S_pad) f32.
    xm = x.reshape(tb * C, HW).astype(jnp.bfloat16)
    xp = jnp.dot(xm, p_ref[...], preferred_element_type=jnp.float32)
    xp = xp.reshape(tb, C, s_pad)                        # (TB, C, S_pad), f32

    # avg path is linear in the filter -> one reduction with the summed filter.
    avg = jnp.sum(xp * dsum_ref[...][None], axis=-1) * inv_s          # (TB, C)

    dct = dct_ref[...]                                   # hoisted (F, C, S_pad)
    max_acc = jnp.zeros((tb, C), jnp.float32)
    min_acc = jnp.zeros((tb, C), jnp.float32)
    for f in range(num_freq):                            # small static unroll
        y = xp * dct[f][None]                            # (TB, C, S_pad), VPU
        max_acc = max_acc + jnp.max(jnp.where(valid, y, neg_big), axis=-1)
        min_acc = min_acc + jnp.min(jnp.where(valid, y, pos_big), axis=-1)

    # fc (two bias-free 1x1 convs + ReLU) batched over {avg, max, min} x TB.
    maps = jnp.concatenate([avg, max_acc, min_acc], axis=0) * inv_f   # (3*TB, C)
    h = jnp.dot(maps, w1t_ref[...], preferred_element_type=jnp.float32)
    h = jnp.maximum(h, 0.0)                                           # (3*TB, Cr)
    o = jnp.dot(h, w2t_ref[...], preferred_element_type=jnp.float32)  # (3*TB, C)
    logits = jnp.sum(o.reshape(3, tb, C), axis=0)                     # (TB, C)
    att = jax.nn.sigmoid(logits)[:, :, None]                          # (TB, C, 1)

    out_ref[...] = (x * att).astype(out_ref.dtype)       # broadcast over HW lanes


def _choose_tb(batch, bytes_per_batch, target_bytes=6 * 1024 * 1024):
    """Largest divisor of `batch` whose tile stays <= ~target_bytes (>= 1)."""
    cap = max(1, int(target_bytes) // max(1, int(bytes_per_batch)))
    cap = min(cap, batch)
    tb = 1
    for d in range(1, cap + 1):
        if batch % d == 0:
            tb = d
    return tb


def mfca_pallas(x, dct, w1, w2, *, stream_dtype=jnp.float32, tb=None):
    """x: (B,C,H,W) f32; dct: (F,C,dct_h,dct_w) f32; w1: (Cr,C); w2: (C,Cr).

    stream_dtype=jnp.bfloat16 halves x/out HBM traffic (recommended default on
    v5e/v6e once the kernel is HBM-bound); in-kernel math stays f32.
    """
    B, C, H, W = x.shape
    F_, Cd, dh, dw = dct.shape
    assert Cd == C
    HW = H * W
    S = dh * dw
    S_pad = ((S + 127) // 128) * 128          # lane-dense S
    Cr = w1.shape[0]

    # Adaptive avg-pool (H,W)->(dh,dw) as one (HW, S) matrix = kron(Ph, Pw)^T,
    # zero-padded to S_pad and stored in bf16 (MXU-native input).
    Ph = adaptive_pool_matrix(H, dh)
    Pw = adaptive_pool_matrix(W, dw)
    P = np.zeros((HW, S_pad), np.float32)
    P[:, :S] = np.kron(Ph, Pw).T
    P = jnp.asarray(P, dtype=jnp.bfloat16)

    dct_flat = jnp.pad(dct.reshape(F_, C, S).astype(jnp.float32),
                       ((0, 0), (0, 0), (0, S_pad - S)))
    dct_sum = jnp.sum(dct_flat, axis=0)
    w1t = jnp.asarray(w1, jnp.float32).T      # (C, Cr)
    w2t = jnp.asarray(w2, jnp.float32).T      # (Cr, C)

    itemsize = jnp.dtype(stream_dtype).itemsize
    if tb is None:
        tb = _choose_tb(B, C * HW * itemsize)
    assert B % tb == 0

    x_flat = x.reshape(B, C, HW).astype(stream_dtype)

    # VMEM budget: actual need (double-buffered x/out tiles + resident
    # constants + live f32 intermediates) + 25% margin, capped well under
    # v7x's 64 MiB physical VMEM.
    tile_bytes = tb * C * HW * itemsize
    const_bytes = HW * S_pad * 2 + (F_ + 1) * C * S_pad * 4 + 2 * C * Cr * 4
    interm_bytes = 4 * tb * C * S_pad * 4
    needed = 4 * tile_bytes + 2 * const_bytes + interm_bytes
    vmem_limit = int(min(max(needed * 5 // 4, 12 * 1024 * 1024), 56 * 1024 * 1024))

    kernel = functools.partial(mfca_kernel, s_true=S)

    out_flat = pl.pallas_call(
        kernel,
        out_shape=jax.ShapeDtypeStruct((B, C, HW), stream_dtype),
        grid=(B // tb,),
        in_specs=[
            pl.BlockSpec((tb, C, HW), lambda b: (b, 0, 0)),      # streamed x
            pl.BlockSpec((HW, S_pad), lambda b: (0, 0)),         # pooling matrix
            pl.BlockSpec((C, S_pad), lambda b: (0, 0)),          # sum of DCT filters
            pl.BlockSpec((F_, C, S_pad), lambda b: (0, 0, 0)),   # DCT filters
            pl.BlockSpec((C, Cr), lambda b: (0, 0)),             # fc.0 weight^T
            pl.BlockSpec((Cr, C), lambda b: (0, 0)),             # fc.2 weight^T
        ],
        out_specs=pl.BlockSpec((tb, C, HW), lambda b: (b, 0, 0)),
        compiler_params=pltpu.CompilerParams(
            dimension_semantics=("parallel",),
            vmem_limit_bytes=vmem_limit,
        ),
    )(x_flat, P, dct_sum, dct_flat, w1t, w2t)

    return out_flat.reshape(B, C, H, W)


# ----------------------------------------------------------------------------
# Pure-JAX reference (HIGHEST precision, for validation)
# ----------------------------------------------------------------------------
def mfca_reference(x, dct, w1, w2, Ph, Pw):
    hp = jax.lax.Precision.HIGHEST
    xp = jnp.einsum('bchw,ph,qw->bcpq', x, Ph, Pw, precision=hp)
    F_ = dct.shape[0]
    avg = jnp.zeros(x.shape[:2], jnp.float32)
    mx = jnp.zeros(x.shape[:2], jnp.float32)
    mn = jnp.zeros(x.shape[:2], jnp.float32)
    for f in range(F_):
        y = xp * dct[f][None]
        avg = avg + jnp.mean(y, axis=(2, 3))
        mx = mx + jnp.max(y, axis=(2, 3))
        mn = mn + jnp.min(y, axis=(2, 3))
    avg, mx, mn = avg / F_, mx / F_, mn / F_

    def fc(v):  # v: (B, C)
        h = jnp.maximum(jnp.dot(v, w1.T, precision=hp), 0.0)
        return jnp.dot(h, w2.T, precision=hp)

    att = jax.nn.sigmoid(fc(avg) + fc(mx) + fc(mn))
    return x * att[:, :, None, None]


# ----------------------------------------------------------------------------
if __name__ == "__main__":
    # Small config consistent with the module.
    B, C, H, W = 2, 32, 16, 16
    dct_h, dct_w = 14, 14
    frequency_branches = 4
    frequency_selection = 'top'
    reduction = 8
    Cr = C // reduction

    # DCT filter buffers (same deterministic construction as the module).
    mapper_x, mapper_y = get_freq_indices(frequency_selection + str(frequency_branches))
    mapper_x = [mx * (dct_h // 7) for mx in mapper_x]
    mapper_y = [my * (dct_w // 7) for my in mapper_y]
    dct = np.stack(
        [get_dct_filter(dct_h, dct_w, mapper_x[i], mapper_y[i], C)
         for i in range(frequency_branches)], axis=0)      # (F, C, dct_h, dct_w)
    dct = jnp.asarray(dct, jnp.float32)

    # fc weights (Conv2d 1x1, no bias) — deterministic random init.
    key = jax.random.PRNGKey(0)
    kx, k1, k2 = jax.random.split(key, 3)
    w1 = jax.random.normal(k1, (Cr, C), jnp.float32) / math.sqrt(C)
    w2 = jax.random.normal(k2, (C, Cr), jnp.float32) / math.sqrt(Cr)

    # Input (NCHW, as in PyTorch).
    x = jax.random.normal(kx, (B, C, H, W), jnp.float32)

    # Reference.
    Ph = jnp.asarray(adaptive_pool_matrix(H, dct_h))
    Pw = jnp.asarray(adaptive_pool_matrix(W, dct_w))
    ref = mfca_reference(x, dct, w1, w2, Ph, Pw)

    # 1) f32 streaming (module semantics). Tolerance covers the deliberate
    #    bf16 MXU inputs of the fused pooling matmul vs the HIGHEST-precision
    #    XLA reference.
    out = mfca_pallas(x, dct, w1, w2)
    out = jax.block_until_ready(out)
    np.testing.assert_allclose(np.asarray(out), np.asarray(ref), rtol=2e-2, atol=2e-2)

    # 2) bf16 streaming of x/out (HBM-bandwidth optimization for v5e/v6e);
    #    in-kernel math stays f32. Compare against the f32 reference evaluated
    #    on the bf16-quantized input.
    x_bf = x.astype(jnp.bfloat16).astype(jnp.float32)
    ref_bf = mfca_reference(x_bf, dct, w1, w2, Ph, Pw)
    out_bf = mfca_pallas(x, dct, w1, w2, stream_dtype=jnp.bfloat16)
    out_bf = jax.block_until_ready(out_bf)
    np.testing.assert_allclose(np.asarray(out_bf, dtype=np.float32),
                               np.asarray(ref_bf), rtol=3e-2, atol=3e-2)

    print("KERNEL_OK")
</pallas_src>

<mosaic_0001>
module attributes {stable_mosaic.version = 11 : i64} {
  func.func @mfca_kernel(%arg0: i32, %arg1: memref<2x32x256xf32, #tpu.memory_space<vmem>>, %arg2: memref<256x256xbf16, #tpu.memory_space<vmem>>, %arg3: memref<32x256xf32, #tpu.memory_space<vmem>>, %arg4: memref<4x32x256xf32, #tpu.memory_space<vmem>>, %arg5: memref<32x4xf32, #tpu.memory_space<vmem>>, %arg6: memref<4x32xf32, #tpu.memory_space<vmem>>, %arg7: memref<2x32x256xf32, #tpu.memory_space<vmem>>) attributes {dimension_semantics = [#tpu.dimension_semantics<parallel>], iteration_bounds = array<i64: 1>, scalar_prefetch = 0 : i64, scratch_operands = 0 : i64, tpu.core_type = #tpu.core_type<tc>, window_params = [{transform_indices = @transform_0, window_bounds = array<i64: 2, 32, 256>}, {pipeline_mode = #tpu.pipeline_mode<synchronous>, transform_indices = @transform_1, window_bounds = array<i64: 256, 256>}, {pipeline_mode = #tpu.pipeline_mode<synchronous>, transform_indices = @transform_2, window_bounds = array<i64: 32, 256>}, {pipeline_mode = #tpu.pipeline_mode<synchronous>, transform_indices = @transform_3, window_bounds = array<i64: 4, 32, 256>}, {pipeline_mode = #tpu.pipeline_mode<synchronous>, transform_indices = @transform_4, window_bounds = array<i64: 32, 4>}, {pipeline_mode = #tpu.pipeline_mode<synchronous>, transform_indices = @transform_5, window_bounds = array<i64: 4, 32>}, {transform_indices = @transform_6, window_bounds = array<i64: 2, 32, 256>}]} {
    %0 = tpu.iota {dimensions = array<i32: 2>} : vector<1x1x256xi32>
    %c196_i32 = arith.constant 196 : i32
    %1 = vector.broadcast %c196_i32 : i32 to vector<1x1x256xi32>
    %2 = arith.cmpi slt, %0, %1 : vector<1x1x256xi32>
    %c0 = arith.constant 0 : index
    %c0_0 = arith.constant 0 : index
    %c0_1 = arith.constant 0 : index
    %3 = vector.load %arg1[%c0, %c0_0, %c0_1] : memref<2x32x256xf32, #tpu.memory_space<vmem>>, vector<2x32x256xf32>
    %4 = vector.shape_cast %3 : vector<2x32x256xf32> to vector<64x256xf32>
    %5 = arith.truncf %4 : vector<64x256xf32> to vector<64x256xbf16>
    %c0_2 = arith.constant 0 : index
    %c0_3 = arith.constant 0 : index
    %6 = vector.load %arg2[%c0_2, %c0_3] : memref<256x256xbf16, #tpu.memory_space<vmem>>, vector<256x256xbf16>
    %cst = arith.constant dense<0.000000e+00> : vector<64x256xf32>
    %7 = tpu.matmul %5, %6, %cst {dimension_numbers = #tpu.dot_dimension_numbers<[1], [0], [0], [1], [0, 0, 1, 1], [], []>} : vector<64x256xbf16>, vector<256x256xbf16>, vector<64x256xf32> -> vector<64x256xf32>
    %8 = vector.shape_cast %7 : vector<64x256xf32> to vector<2x32x256xf32>
    %c0_4 = arith.constant 0 : index
    %c0_5 = arith.constant 0 : index
    %9 = vector.load %arg3[%c0_4, %c0_5] : memref<32x256xf32, #tpu.memory_space<vmem>>, vector<32x256xf32>
    %10 = vector.shape_cast %9 : vector<32x256xf32> to vector<1x32x256xf32>
    %11 = vector.broadcast %10 : vector<1x32x256xf32> to vector<2x32x256xf32>
    %12 = arith.mulf %8, %11 : vector<2x32x256xf32>
    %cst_6 = arith.constant dense<0.000000e+00> : vector<2x32xf32>
    %13 = vector.multi_reduction <add>, %12, %cst_6 [2] : vector<2x32x256xf32> to vector<2x32xf32>
    %cst_7 = arith.constant 0.00510204071 : f32
    %14 = vector.broadcast %cst_7 : f32 to vector<2x32xf32>
    %15 = arith.mulf %13, %14 : vector<2x32xf32>
    %c0_8 = arith.constant 0 : index
    %c0_9 = arith.constant 0 : index
    %c0_10 = arith.constant 0 : index
    %16 = vector.load %arg4[%c0_8, %c0_9, %c0_10] : memref<4x32x256xf32, #tpu.memory_space<vmem>>, vector<4x32x256xf32>
    %cst_11 = arith.constant 0.000000e+00 : f32
    %17 = vector.broadcast %cst_11 : f32 to vector<2x32xf32>
    %cst_12 = arith.constant 0.000000e+00 : f32
    %18 = vector.broadcast %cst_12 : f32 to vector<2x32xf32>
    %19 = vector.extract_strided_slice %16 {offsets = [0, 0, 0], sizes = [1, 32, 256], strides = [1, 1, 1]} : vector<4x32x256xf32> to vector<1x32x256xf32>
    %20 = vector.shape_cast %19 : vector<1x32x256xf32> to vector<32x256xf32>
    %21 = vector.shape_cast %20 : vector<32x256xf32> to vector<1x32x256xf32>
    %22 = vector.broadcast %21 : vector<1x32x256xf32> to vector<2x32x256xf32>
    %23 = arith.mulf %8, %22 : vector<2x32x256xf32>
    %cst_13 = arith.constant -3.000000e+38 : f32
    %24 = vector.shape_cast %2 : vector<1x1x256xi1> to vector<1x1x256xi1>
    %25 = vector.broadcast %24 : vector<1x1x256xi1> to vector<2x32x256xi1>
    %26 = vector.broadcast %cst_13 : f32 to vector<2x32x256xf32>
    %27 = arith.select %25, %23, %26 : vector<2x32x256xi1>, vector<2x32x256xf32>
    %cst_14 = arith.constant dense<0xFF800000> : vector<2x32xf32>
    %28 = vector.multi_reduction <maximumf>, %27, %cst_14 [2] : vector<2x32x256xf32> to vector<2x32xf32>
    %29 = arith.addf %17, %28 : vector<2x32xf32>
    %cst_15 = arith.constant 3.000000e+38 : f32
    %30 = vector.shape_cast %2 : vector<1x1x256xi1> to vector<1x1x256xi1>
    %31 = vector.broadcast %30 : vector<1x1x256xi1> to vector<2x32x256xi1>
    %32 = vector.broadcast %cst_15 : f32 to vector<2x32x256xf32>
    %33 = arith.select %31, %23, %32 : vector<2x32x256xi1>, vector<2x32x256xf32>
    %cst_16 = arith.constant dense<0x7F800000> : vector<2x32xf32>
    %34 = vector.multi_reduction <minimumf>, %33, %cst_16 [2] : vector<2x32x256xf32> to vector<2x32xf32>
    %35 = arith.addf %18, %34 : vector<2x32xf32>
    %36 = vector.extract_strided_slice %16 {offsets = [1, 0, 0], sizes = [1, 32, 256], strides = [1, 1, 1]} : vector<4x32x256xf32> to vector<1x32x256xf32>
    %37 = vector.shape_cast %36 : vector<1x32x256xf32> to vector<32x256xf32>
    %38 = vector.shape_cast %37 : vector<32x256xf32> to vector<1x32x256xf32>
    %39 = vector.broadcast %38 : vector<1x32x256xf32> to vector<2x32x256xf32>
    %40 = arith.mulf %8, %39 : vector<2x32x256xf32>
    %cst_17 = arith.constant -3.000000e+38 : f32
    %41 = vector.shape_cast %2 : vector<1x1x256xi1> to vector<1x1x256xi1>
    %42 = vector.broadcast %41 : vector<1x1x256xi1> to vector<2x32x256xi1>
    %43 = vector.broadcast %cst_17 : f32 to vector<2x32x256xf32>
    %44 = arith.select %42, %40, %43 : vector<2x32x256xi1>, vector<2x32x256xf32>
    %cst_18 = arith.constant dense<0xFF800000> : vector<2x32xf32>
    %45 = vector.multi_reduction <maximumf>, %44, %cst_18 [2] : vector<2x32x256xf32> to vector<2x32xf32>
    %46 = arith.addf %29, %45 : vector<2x32xf32>
    %cst_19 = arith.constant 3.000000e+38 : f32
    %47 = vector.shape_cast %2 : vector<1x1x256xi1> to vector<1x1x256xi1>
    %48 = vector.broadcast %47 : vector<1x1x256xi1> to vector<2x32x256xi1>
    %49 = vector.broadcast %cst_19 : f32 to vector<2x32x256xf32>
    %50 = arith.select %48, %40, %49 : vector<2x32x256xi1>, vector<2x32x256xf32>
    %cst_20 = arith.constant dense<0x7F800000> : vector<2x32xf32>
    %51 = vector.multi_reduction <minimumf>, %50, %cst_20 [2] : vector<2x32x256xf32> to vector<2x32xf32>
    %52 = arith.addf %35, %51 : vector<2x32xf32>
    %53 = vector.extract_strided_slice %16 {offsets = [2, 0, 0], sizes = [1, 32, 256], strides = [1, 1, 1]} : vector<4x32x256xf32> to vector<1x32x256xf32>
    %54 = vector.shape_cast %53 : vector<1x32x256xf32> to vector<32x256xf32>
    %55 = vector.shape_cast %54 : vector<32x256xf32> to vector<1x32x256xf32>
    %56 = vector.broadcast %55 : vector<1x32x256xf32> to vector<2x32x256xf32>
    %57 = arith.mulf %8, %56 : vector<2x32x256xf32>
    %cst_21 = arith.constant -3.000000e+38 : f32
    %58 = vector.shape_cast %2 : vector<1x1x256xi1> to vector<1x1x256xi1>
    %59 = vector.broadcast %58 : vector<1x1x256xi1> to vector<2x32x256xi1>
    %60 = vector.broadcast %cst_21 : f32 to vector<2x32x256xf32>
    %61 = arith.select %59, %57, %60 : vector<2x32x256xi1>, vector<2x32x256xf32>
    %cst_22 = arith.constant dense<0xFF800000> : vector<2x32xf32>
    %62 = vector.multi_reduction <maximumf>, %61, %cst_22 [2] : vector<2x32x256xf32> to vector<2x32xf32>
    %63 = arith.addf %46, %62 : vector<2x32xf32>
    %cst_23 = arith.constant 3.000000e+38 : f32
    %64 = vector.shape_cast %2 : vector<1x1x256xi1> to vector<1x1x256xi1>
    %65 = vector.broadcast %64 : vector<1x1x256xi1> to vector<2x32x256xi1>
    %66 = vector.broadcast %cst_23 : f32 to vector<2x32x256xf32>
    %67 = arith.select %65, %57, %66 : vector<2x32x256xi1>, vector<2x32x256xf32>
    %cst_24 = arith.constant dense<0x7F800000> : vector<2x32xf32>
    %68 = vector.multi_reduction <minimumf>, %67, %cst_24 [2] : vector<2x32x256xf32> to vector<2x32xf32>
    %69 = arith.addf %52, %68 : vector<2x32xf32>
    %70 = vector.extract_strided_slice %16 {offsets = [3, 0, 0], sizes = [1, 32, 256], strides = [1, 1, 1]} : vector<4x32x256xf32> to vector<1x32x256xf32>
    %71 = vector.shape_cast %70 : vector<1x32x256xf32> to vector<32x256xf32>
    %72 = vector.shape_cast %71 : vector<32x256xf32> to vector<1x32x256xf32>
    %73 = vector.broadcast %72 : vector<1x32x256xf32> to vector<2x32x256xf32>
    %74 = arith.mulf %8, %73 : vector<2x32x256xf32>
    %cst_25 = arith.constant -3.000000e+38 : f32
    %75 = vector.shape_cast %2 : vector<1x1x256xi1> to vector<1x1x256xi1>
    %76 = vector.broadcast %75 : vector<1x1x256xi1> to vector<2x32x256xi1>
    %77 = vector.broadcast %cst_25 : f32 to vector<2x32x256xf32>
    %78 = arith.select %76, %74, %77 : vector<2x32x256xi1>, vector<2x32x256xf32>
    %cst_26 = arith.constant dense<0xFF800000> : vector<2x32xf32>
    %79 = vector.multi_reduction <maximumf>, %78, %cst_26 [2] : vector<2x32x256xf32> to vector<2x32xf32>
    %80 = arith.addf %63, %79 : vector<2x32xf32>
    %cst_27 = arith.constant 3.000000e+38 : f32
    %81 = vector.shape_cast %2 : vector<1x1x256xi1> to vector<1x1x256xi1>
    %82 = vector.broadcast %81 : vector<1x1x256xi1> to vector<2x32x256xi1>
    %83 = vector.broadcast %cst_27 : f32 to vector<2x32x256xf32>
    %84 = arith.select %82, %74, %83 : vector<2x32x256xi1>, vector<2x32x256xf32>
    %cst_28 = arith.constant dense<0x7F800000> : vector<2x32xf32>
    %85 = vector.multi_reduction <minimumf>, %84, %cst_28 [2] : vector<2x32x256xf32> to vector<2x32xf32>
    %86 = arith.addf %69, %85 : vector<2x32xf32>
    %87 = tpu.concatenate %15, %80, %86 in 0 : vector<2x32xf32>, vector<2x32xf32>, vector<2x32xf32> -> vector<6x32xf32>
    %cst_29 = arith.constant 2.500000e-01 : f32
    %88 = vector.broadcast %cst_29 : f32 to vector<6x32xf32>
    %89 = arith.mulf %87, %88 : vector<6x32xf32>
    %c0_30 = arith.constant 0 : index
    %c0_31 = arith.constant 0 : index
    %90 = vector.load %arg5[%c0_30, %c0_31] : memref<32x4xf32, #tpu.memory_space<vmem>>, vector<32x4xf32>
    %cst_32 = arith.constant dense<0.000000e+00> : vector<6x4xf32>
    %91 = tpu.matmul %89, %90, %cst_32 {dimension_numbers = #tpu.dot_dimension_numbers<[1], [0], [0], [1], [0, 0, 1, 1], [], []>} : vector<6x32xf32>, vector<32x4xf32>, vector<6x4xf32> -> vector<6x4xf32>
    %cst_33 = arith.constant 0.000000e+00 : f32
    %92 = vector.broadcast %cst_33 : f32 to vector<6x4xf32>
    %93 = arith.maximumf %91, %92 : vector<6x4xf32>
    %c0_34 = arith.constant 0 : index
    %c0_35 = arith.constant 0 : index
    %94 = vector.load %arg6[%c0_34, %c0_35] : memref<4x32xf32, #tpu.memory_space<vmem>>, vector<4x32xf32>
    %cst_36 = arith.constant dense<0.000000e+00> : vector<6x32xf32>
    %95 = tpu.matmul %93, %94, %cst_36 {dimension_numbers = #tpu.dot_dimension_numbers<[1], [0], [0], [1], [0, 0, 1, 1], [], []>} : vector<6x4xf32>, vector<4x32xf32>, vector<6x32xf32> -> vector<6x32xf32>
    %96 = vector.shape_cast %95 : vector<6x32xf32> to vector<3x2x32xf32>
    %cst_37 = arith.constant dense<0.000000e+00> : vector<2x32xf32>
    %97 = vector.multi_reduction <add>, %96, %cst_37 [0] : vector<3x2x32xf32> to vector<2x32xf32>
    %98 = arith.negf %97 : vector<2x32xf32>
    %99 = math.exp %98 : vector<2x32xf32>
    %cst_38 = arith.constant 1.000000e+00 : f32
    %100 = vector.broadcast %cst_38 : f32 to vector<2x32xf32>
    %101 = arith.addf %100, %99 : vector<2x32xf32>
    %102 = arith.divf %100, %101 : vector<2x32xf32>
    %103 = vector.shape_cast %102 : vector<2x32xf32> to vector<2x32x1xf32>
    %104 = vector.broadcast %103 : vector<2x32x1xf32> to vector<2x32x256xf32>
    %105 = arith.mulf %3, %104 : vector<2x32x256xf32>
    %c0_39 = arith.constant 0 : index
    %c0_40 = arith.constant 0 : index
    %c0_41 = arith.constant 0 : index
    %106 = vector.load %arg7[%c0_39, %c0_40, %c0_41] : memref<2x32x256xf32, #tpu.memory_space<vmem>>, vector<2x32x256xf32>
    tpu.vector_store %arg7[%c0_39, %c0_40, %c0_41], %105 {strides = array<i32>} : memref<2x32x256xf32, #tpu.memory_space<vmem>>, vector<2x32x256xf32>,
    return
  }
  func.func @transform_0(%arg0: i32) -> (i32, i32, i32) {
    %c0_i32 = arith.constant 0 : i32
    %c0_i32_0 = arith.constant 0 : i32
    %c0_i32_1 = arith.constant 0 : i32
    return %arg0, %c0_i32, %c0_i32_0 : i32, i32, i32
  }
  func.func @transform_1(%arg0: i32) -> (i32, i32) {
    %c0_i32 = arith.constant 0 : i32
    %c0_i32_0 = arith.constant 0 : i32
    %c0_i32_1 = arith.constant 0 : i32
    return %c0_i32, %c0_i32_0 : i32, i32
  }
  func.func @transform_2(%arg0: i32) -> (i32, i32) {
    %c0_i32 = arith.constant 0 : i32
    %c0_i32_0 = arith.constant 0 : i32
    %c0_i32_1 = arith.constant 0 : i32
    return %c0_i32, %c0_i32_0 : i32, i32
  }
  func.func @transform_3(%arg0: i32) -> (i32, i32, i32) {
    %c0_i32 = arith.constant 0 : i32
    %c0_i32_0 = arith.constant 0 : i32
    %c0_i32_1 = arith.constant 0 : i32
    %c0_i32_2 = arith.constant 0 : i32
    return %c0_i32, %c0_i32_0, %c0_i32_1 : i32, i32, i32
  }
  func.func @transform_4(%arg0: i32) -> (i32, i32) {
    %c0_i32 = arith.constant 0 : i32
    %c0_i32_0 = arith.constant 0 : i32
    %c0_i32_1 = arith.constant 0 : i32
    return %c0_i32, %c0_i32_0 : i32, i32
  }
  func.func @transform_5(%arg0: i32) -> (i32, i32) {
    %c0_i32 = arith.constant 0 : i32
    %c0_i32_0 = arith.constant 0 : i32
    %c0_i32_1 = arith.constant 0 : i32
    return %c0_i32, %c0_i32_0 : i32, i32
  }
  func.func @transform_6(%arg0: i32) -> (i32, i32, i32) {
    %c0_i32 = arith.constant 0 : i32
    %c0_i32_0 = arith.constant 0 : i32
    %c0_i32_1 = arith.constant 0 : i32
    return %arg0, %c0_i32, %c0_i32_0 : i32, i32, i32
  }
}

</mosaic_0001>

<llo_original>
// kernel: tpu_custom_call.1
$region0: #{tpu_custom_call.1}
  #allocation0 [shape = 'u32[]', space=smem, size = 0x4, offset = 0x4, fixed_abs, tag = 'smem constant byte address 0x4 - core index']
  #allocation1 [shape = 'u32[144,128]{1,0:T(1,128)}', space=vmem, size = 0x12000, scoped, tag = 'internal scratch']
  %s0 = inlined_call_operand.hbm [shape: f32[2,32,256], index: 0, kind: input, shape index: {}]
  %s1 = inlined_call_operand.hbm [shape: bf16[256,256], index: 1, kind: input, shape index: {}]
  %s2 = inlined_call_operand.hbm [shape: f32[32,256], index: 2, kind: input, shape index: {}]
  %s3 = inlined_call_operand.hbm [shape: f32[4,32,256], index: 3, kind: input, shape index: {}]
  %s4 = inlined_call_operand.vmem [shape: f32[32,4], index: 4, kind: input, shape index: {}]
  %s5 = inlined_call_operand.vmem [shape: f32[4,32], index: 5, kind: input, shape index: {}]
  %s6 = inlined_call_operand.hbm [shape: f32[2,32,256], index: 6, kind: output, shape index: {}]
  %s7 = sld [smem:[#allocation0]]
  $region50: #{tpu_custom_call.1} parent=0
    _
  %s9 = ssub.s32 1, %s7
  %s10 = scalar_select 0, %s9, %s7
  $region1: #{tpu_custom_call.1} parent=0
    #allocation2 [shape = 'u8[65536]{0}', space=vmem, size = 0x10000, scoped, tag = 'input window, operand 0, single buffered']
    #allocation3 [shape = 's32[1]{0}', space=sflag, size = 0x4, scoped, tag = 'scoped memory for tpu_custom_call.1']
    #allocation4 [shape = 's32[1]{0}', space=sflag, size = 0x4, scoped, tag = 'scoped memory for tpu_custom_call.1']
    #allocation5 [shape = 'u8[131072]{0}', space=vmem, size = 0x20000, scoped, tag = 'input window, operand 1, single buffered']
    #allocation6 [shape = 's32[1]{0}', space=sflag, size = 0x4, scoped, tag = 'scoped memory for tpu_custom_call.1']
    #allocation7 [shape = 'u8[32768]{0}', space=vmem, size = 0x8000, scoped, tag = 'input window, operand 2, single buffered']
    #allocation8 [shape = 'u8[131072]{0}', space=vmem, size = 0x20000, scoped, tag = 'input window, operand 3, single buffered']
    #allocation9 [shape = 's32[1]{0}', space=sflag, size = 0x4, scoped, tag = 'scoped memory for tpu_custom_call.1']
    #allocation10 [shape = 'u8[65536]{0}', space=vmem, size = 0x10000, scoped, tag = 'output window, operand 0, single buffered']
    %11 = vsyncpa [#allocation3], 0
    %12 = vsyncpa [#allocation6], 0
    %13 = vsyncpa [#allocation9], 0
    %14 = vsyncpa [#allocation4], 0
    // Predicated region
    $region2: #{tpu_custom_call.1} parent=1 // pred_check
      _
    $region3: #{tpu_custom_call.1} parent=1 // pred_check_branch
      %16 = sbr.rel (0) target = $region5
    $region4: #{tpu_custom_call.1} parent=1 // pred_region
      %s18 = ssub.s32 2048, 2048
      %19 = vsyncadd [#allocation3], %s18
      %s20 = sshll.u32 [#allocation2], 4
      %s21 = int_to_ptr.vmem [resolvable:$true] %s20
      %26 = dma.hbm_to_vmem [thread:$0]  %s0, 2048, %s21, [#allocation3], 256, 256, 16
    $region5: #{tpu_custom_call.1} parent=1 // pred_fallthru
      _
    // Predicated region
    $region6: #{tpu_custom_call.1} parent=1 // pred_check
      _
    $region7: #{tpu_custom_call.1} parent=1 // pred_check_branch
      %28 = sbr.rel (0) target = $region9
    $region8: #{tpu_custom_call.1} parent=1 // pred_region
      %s30 = ssub.s32 4096, 4096
      %31 = vsyncadd [#allocation6], %s30
      %s32 = sshll.u32 [#allocation5], 4
      %s33 = int_to_ptr.vmem [resolvable:$true] %s32
      %38 = dma.hbm_to_vmem [thread:$0]  %s1, 4096, %s33, [#allocation6], 128, 128, 8
    $region9: #{tpu_custom_call.1} parent=1 // pred_fallthru
      _
    // Predicated region
    $region10: #{tpu_custom_call.1} parent=1 // pred_check
      _
    $region11: #{tpu_custom_call.1} parent=1 // pred_check_branch
      %40 = sbr.rel (0) target = $region13
    $region12: #{tpu_custom_call.1} parent=1 // pred_region
      %s42 = ssub.s32 1024, 1024
      %43 = vsyncadd [#allocation6], %s42
      %s44 = sshll.u32 [#allocation7], 4
      %s45 = int_to_ptr.vmem [resolvable:$true] %s44
      %50 = dma.hbm_to_vmem [thread:$0]  %s2, 1024, %s45, [#allocation6], 256, 256, 16
    $region13: #{tpu_custom_call.1} parent=1 // pred_fallthru
      _
    // Predicated region
    $region14: #{tpu_custom_call.1} parent=1 // pred_check
      _
    $region15: #{tpu_custom_call.1} parent=1 // pred_check_branch
      %52 = sbr.rel (0) target = $region17
    $region16: #{tpu_custom_call.1} parent=1 // pred_region
      %s54 = ssub.s32 4096, 4096
      %55 = vsyncadd [#allocation9], %s54
      %s56 = sshll.u32 [#allocation8], 4
      %s57 = int_to_ptr.vmem [resolvable:$true] %s56
      %62 = dma.hbm_to_vmem [thread:$0]  %s3, 4096, %s57, [#allocation9], 256, 256, 16
    $region17: #{tpu_custom_call.1} parent=1 // pred_fallthru
      _
    // Predicated region
    $region18: #{tpu_custom_call.1} parent=1 // pred_check
      _
    $region19: #{tpu_custom_call.1} parent=1 // pred_check_branch
      %64 = sbr.rel (0) target = $region21
    $region20: #{tpu_custom_call.1} parent=1 // pred_region
      _
    $region21: #{tpu_custom_call.1} parent=1 // pred_fallthru
      _
    // Predicated region
    $region22: #{tpu_custom_call.1} parent=1 // pred_check
      _
    $region23: #{tpu_custom_call.1} parent=1 // pred_check_branch
      %66 = sbr.rel (0) target = $region25
    $region24: #{tpu_custom_call.1} parent=1 // pred_region
      _
    $region25: #{tpu_custom_call.1} parent=1 // pred_fallthru
      _
    // Predicated region
    $region26: #{tpu_custom_call.1} parent=1 // pred_check
      _
    $region27: #{tpu_custom_call.1} parent=1 // pred_check_branch
      %68 = sbr.rel (0) target = $region29
    $region28: #{tpu_custom_call.1} parent=1 // pred_region
      %69 = dma.done [#allocation3], 2048
    $region29: #{tpu_custom_call.1} parent=1 // pred_fallthru
      _
    // Predicated region
    $region30: #{tpu_custom_call.1} parent=1 // pred_check
      _
    $region31: #{tpu_custom_call.1} parent=1 // pred_check_branch
      %71 = sbr.rel (0) target = $region33
    $region32: #{tpu_custom_call.1} parent=1 // pred_region
      %72 = dma.done [#allocation6], 4096
    $region33: #{tpu_custom_call.1} parent=1 // pred_fallthru
      _
    // Predicated region
    $region34: #{tpu_custom_call.1} parent=1 // pred_check
      _
    $region35: #{tpu_custom_call.1} parent=1 // pred_check_branch
      %74 = sbr.rel (0) target = $region37
    $region36: #{tpu_custom_call.1} parent=1 // pred_region
      %75 = dma.done [#allocation6], 1024
    $region37: #{tpu_custom_call.1} parent=1 // pred_fallthru
      _
    // Predicated region
    $region38: #{tpu_custom_call.1} parent=1 // pred_check
      _
    $region39: #{tpu_custom_call.1} parent=1 // pred_check_branch
      %77 = sbr.rel (0) target = $region41
    $region40: #{tpu_custom_call.1} parent=1 // pred_region
      %78 = dma.done [#allocation9], 4096
    $region41: #{tpu_custom_call.1} parent=1 // pred_fallthru
      _
    %v79 = vlaneseq
    %v80 = vand.u32 %v79, 127
    %v81 = vadd.s32 %v80, 128
    %vm82 = vcmp.lt.s32.totalorder %v80, 196
    %vm83 = vcmp.lt.s32.totalorder %v81, 196
    %v84 = vld [vmem:[#allocation2] sm:$0xff]
    %v85 = vld [vmem:[#allocation2 + $0x8] sm:$0xff]
    %v86 = vld [vmem:[#allocation2 + $0x10] sm:$0xff]
    %v87 = vld [vmem:[#allocation2 + $0x18] sm:$0xff]
    %v88 = vld [vmem:[#allocation2 + $0x20] sm:$0xff]
    %v89 = vld [vmem:[#allocation2 + $0x28] sm:$0xff]
    %v90 = vld [vmem:[#allocation2 + $0x30] sm:$0xff]
    %v91 = vld [vmem:[#allocation2 + $0x38] sm:$0xff]
    %v92 = vld [vmem:[#allocation2 + $0x40] sm:$0xff]
    %v93 = vld [vmem:[#allocation2 + $0x48] sm:$0xff]
    %v94 = vld [vmem:[#allocation2 + $0x50] sm:$0xff]
    %v95 = vld [vmem:[#allocation2 + $0x58] sm:$0xff]
    %v96 = vld [vmem:[#allocation2 + $0x60] sm:$0xff]
    %v97 = vld [vmem:[#allocation2 + $0x68] sm:$0xff]
    %v98 = vld [vmem:[#allocation2 + $0x70] sm:$0xff]
    %v99 = vld [vmem:[#allocation2 + $0x78] sm:$0xff]
    %v100 = vpack.c.bf16 %v86, %v84
    %v101 = vpack.c.bf16 %v87, %v85
    %v102 = vpack.c.bf16 %v90, %v88
    %v103 = vpack.c.bf16 %v91, %v89
    %v104 = vpack.c.bf16 %v94, %v92
    %v105 = vpack.c.bf16 %v95, %v93
    %v106 = vpack.c.bf16 %v98, %v96
    %v107 = vpack.c.bf16 %v99, %v97
    %v108 = vld [vmem:[#allocation5] sm:$0xff]
    %v109 = vld [vmem:[#allocation5 + $0x8] sm:$0xff]
    %v110 = vld [vmem:[#allocation5 + $0x10] sm:$0xff]
    %v111 = vld [vmem:[#allocation5 + $0x18] sm:$0xff]
    %v112 = vld [vmem:[#allocation5 + $0x20] sm:$0xff]
    %v113 = vld [vmem:[#allocation5 + $0x28] sm:$0xff]
    %v114 = vld [vmem:[#allocation5 + $0x30] sm:$0xff]
    %v115 = vld [vmem:[#allocation5 + $0x38] sm:$0xff]
    %v116 = vld [vmem:[#allocation5 + $0x40] sm:$0xff]
    %v117 = vld [vmem:[#allocation5 + $0x48] sm:$0xff]
    %v118 = vld [vmem:[#allocation5 + $0x50] sm:$0xff]
    %v119 = vld [vmem:[#allocation5 + $0x58] sm:$0xff]
    %v120 = vld [vmem:[#allocation5 + $0x60] sm:$0xff]
    %v121 = vld [vmem:[#allocation5 + $0x68] sm:$0xff]
    %v122 = vld [vmem:[#allocation5 + $0x70] sm:$0xff]
    %v123 = vld [vmem:[#allocation5 + $0x78] sm:$0xff]
    %v124 = vld [vmem:[#allocation5 + $0x80] sm:$0xff]
    %v125 = vld [vmem:[#allocation5 + $0x88] sm:$0xff]
    %v126 = vld [vmem:[#allocation5 + $0x90] sm:$0xff]
    %v127 = vld [vmem:[#allocation5 + $0x98] sm:$0xff]
    %v128 = vld [vmem:[#allocation5 + $0xa0] sm:$0xff]
    %v129 = vld [vmem:[#allocation5 + $0xa8] sm:$0xff]
    %v130 = vld [vmem:[#allocation5 + $0xb0] sm:$0xff]
    %v131 = vld [vmem:[#allocation5 + $0xb8] sm:$0xff]
    %v132 = vld [vmem:[#allocation5 + $0xc0] sm:$0xff]
    %v133 = vld [vmem:[#allocation5 + $0xc8] sm:$0xff]
    %v134 = vld [vmem:[#allocation5 + $0xd0] sm:$0xff]
    %v135 = vld [vmem:[#allocation5 + $0xd8] sm:$0xff]
    %v136 = vld [vmem:[#allocation5 + $0xe0] sm:$0xff]
    %v137 = vld [vmem:[#allocation5 + $0xe8] sm:$0xff]
    %v138 = vld [vmem:[#allocation5 + $0xf0] sm:$0xff]
    %v139 = vld [vmem:[#allocation5 + $0xf8] sm:$0xff]
    %v172 = vunpack.c.l.b16 %v108
    %v173 = vunpack.c.h.b16 %v108
    %v174 = vunpack.c.l.b16 %v109
    %v175 = vunpack.c.h.b16 %v109
    %v176 = vunpack.c.l.b16 %v110
    %v177 = vunpack.c.h.b16 %v110
    %v178 = vunpack.c.l.b16 %v111
    %v179 = vunpack.c.h.b16 %v111
    %v180 = vunpack.c.l.b16 %v112
    %v181 = vunpack.c.h.b16 %v112
    %v182 = vunpack.c.l.b16 %v113
    %v183 = vunpack.c.h.b16 %v113
    %v184 = vunpack.c.l.b16 %v114
    %v185 = vunpack.c.h.b16 %v114
    %v186 = vunpack.c.l.b16 %v115
    %v187 = vunpack.c.h.b16 %v115
    %v188 = vunpack.c.l.b16 %v116
    %v189 = vunpack.c.h.b16 %v116
    %v190 = vunpack.c.l.b16 %v117
    %v191 = vunpack.c.h.b16 %v117
    %v192 = vunpack.c.l.b16 %v118
    %v193 = vunpack.c.h.b16 %v118
    %v194 = vunpack.c.l.b16 %v119
    %v195 = vunpack.c.h.b16 %v119
    %v196 = vunpack.c.l.b16 %v120
    %v197 = vunpack.c.h.b16 %v120
    %v198 = vunpack.c.l.b16 %v121
    %v199 = vunpack.c.h.b16 %v121
    %v200 = vunpack.c.l.b16 %v122
    %v201 = vunpack.c.h.b16 %v122
    %v202 = vunpack.c.l.b16 %v123
    %v203 = vunpack.c.h.b16 %v123
    %v204 = vunpack.c.l.b16 %v124
    %v205 = vunpack.c.h.b16 %v124
    %v206 = vunpack.c.l.b16 %v125
    %v207 = vunpack.c.h.b16 %v125
    %v208 = vunpack.c.l.b16 %v126
    %v209 = vunpack.c.h.b16 %v126
    %v210 = vunpack.c.l.b16 %v127
    %v211 = vunpack.c.h.b16 %v127
    %v212 = vunpack.c.l.b16 %v128
    %v213 = vunpack.c.h.b16 %v128
    %v214 = vunpack.c.l.b16 %v129
    %v215 = vunpack.c.h.b16 %v129
    %v216 = vunpack.c.l.b16 %v130
    %v217 = vunpack.c.h.b16 %v130
    %v218 = vunpack.c.l.b16 %v131
    %v219 = vunpack.c.h.b16 %v131
    %v220 = vunpack.c.l.b16 %v132
    %v221 = vunpack.c.h.b16 %v132
    %v222 = vunpack.c.l.b16 %v133
    %v223 = vunpack.c.h.b16 %v133
    %v224 = vunpack.c.l.b16 %v134
    %v225 = vunpack.c.h.b16 %v134
    %v226 = vunpack.c.l.b16 %v135
    %v227 = vunpack.c.h.b16 %v135
    %v228 = vunpack.c.l.b16 %v136
    %v229 = vunpack.c.h.b16 %v136
    %v230 = vunpack.c.l.b16 %v137
    %v231 = vunpack.c.h.b16 %v137
    %v232 = vunpack.c.l.b16 %v138
    %v233 = vunpack.c.h.b16 %v138
    %v234 = vunpack.c.l.b16 %v139
    %v235 = vunpack.c.h.b16 %v139
    %v236 = vpack.c.b16 %v174, %v172
    %v237 = vpack.c.b16 %v175, %v173
    %v238 = vpack.c.b16 %v178, %v176
    %v239 = vpack.c.b16 %v179, %v177
    %v240 = vpack.c.b16 %v182, %v180
    %v241 = vpack.c.b16 %v183, %v181
    %v242 = vpack.c.b16 %v186, %v184
    %v243 = vpack.c.b16 %v187, %v185
    %v244 = vpack.c.b16 %v190, %v188
    %v245 = vpack.c.b16 %v191, %v189
    %v246 = vpack.c.b16 %v194, %v192
    %v247 = vpack.c.b16 %v195, %v193
    %v248 = vpack.c.b16 %v198, %v196
    %v249 = vpack.c.b16 %v199, %v197
    %v250 = vpack.c.b16 %v202, %v200
    %v251 = vpack.c.b16 %v203, %v201
    %v252 = vpack.c.b16 %v206, %v204
    %v253 = vpack.c.b16 %v207, %v205
    %v254 = vpack.c.b16 %v210, %v208
    %v255 = vpack.c.b16 %v211, %v209
    %v256 = vpack.c.b16 %v214, %v212
    %v257 = vpack.c.b16 %v215, %v213
    %v258 = vpack.c.b16 %v218, %v216
    %v259 = vpack.c.b16 %v219, %v217
    %v260 = vpack.c.b16 %v222, %v220
    %v261 = vpack.c.b16 %v223, %v221
    %v262 = vpack.c.b16 %v226, %v224
    %v263 = vpack.c.b16 %v227, %v225
    %v264 = vpack.c.b16 %v230, %v228
    %v265 = vpack.c.b16 %v231, %v229
    %v266 = vpack.c.b16 %v234, %v232
    %v267 = vpack.c.b16 %v235, %v233
    %300 = vmatprep.subr.bf16.mxu0 %v237
    %301 = vmatpush1.bf16.msra.mxu0 %v236
    %302 = vmatprep.subr.bf16.mxu0 %v239
    %303 = vmatpush1.bf16.msra.mxu0 %v238
    %304 = vmatprep.subr.bf16.mxu0 %v241
    %305 = vmatpush1.bf16.msra.mxu0 %v240
    %306 = vmatprep.subr.bf16.mxu0 %v243
    %307 = vmatpush1.bf16.msra.mxu0 %v242
    %308 = vmatprep.subr.bf16.mxu0 %v245
    %309 = vmatpush1.bf16.msra.mxu0 %v244
    %310 = vmatprep.subr.bf16.mxu0 %v247
    %311 = vmatpush1.bf16.msra.mxu0 %v246
    %312 = vmatprep.subr.bf16.mxu0 %v249
    %313 = vmatpush1.bf16.msra.mxu0 %v248
    %314 = vmatprep.subr.bf16.mxu0 %v251
    %315 = vmatpush1.bf16.msra.mxu0 %v250
    %316 = vmatprep.subr.bf16.mxu0 %v253
    %317 = vmatpush1.bf16.msra.mxu0 %v252
    %318 = vmatprep.subr.bf16.mxu0 %v255
    %319 = vmatpush1.bf16.msra.mxu0 %v254
    %320 = vmatprep.subr.bf16.mxu0 %v257
    %321 = vmatpush1.bf16.msra.mxu0 %v256
    %322 = vmatprep.subr.bf16.mxu0 %v259
    %323 = vmatpush1.bf16.msra.mxu0 %v258
    %324 = vmatprep.subr.bf16.mxu0 %v261
    %325 = vmatpush1.bf16.msra.mxu0 %v260
    %326 = vmatprep.subr.bf16.mxu0 %v263
    %327 = vmatpush1.bf16.msra.mxu0 %v262
    %328 = vmatprep.subr.bf16.mxu0 %v265
    %329 = vmatpush1.bf16.msra.mxu0 %v264
    %330 = vmatprep.subr.bf16.mxu0 %v267
    %331 = vmatpush1.bf16.msra.mxu0 %v266
    %332 = vmatprep.mubr.bf16.mxu0 %v101
    %333 = vmatmul.mubr.bf16.gmra.mrb[0].mxu0 %v100
    %v334 = vpop.f32.mrb[0].mxu0
    %v335 = vadd.f32 0.0, %v334
    %v336 = vpop.f32.mrb[0].mxu0
    %v337 = vadd.f32 0.0, %v336
    %v338 = vpop.f32.mrb[0].mxu0
    %v339 = vadd.f32 0.0, %v338
    %v340 = vpop.f32.mrb[0].mxu0
    %v341 = vadd.f32 0.0, %v340
    %342 = vmatprep.mubr.bf16.mxu0 %v103
    %343 = vmatmul.mubr.bf16.gmra.mrb[0].mxu0 %v102
    %v344 = vpop.f32.mrb[0].mxu0
    %v345 = vadd.f32 0.0, %v344
    %v346 = vpop.f32.mrb[0].mxu0
    %v347 = vadd.f32 0.0, %v346
    %v348 = vpop.f32.mrb[0].mxu0
    %v349 = vadd.f32 0.0, %v348
    %v350 = vpop.f32.mrb[0].mxu0
    %v351 = vadd.f32 0.0, %v350
    %352 = vmatprep.mubr.bf16.mxu0 %v105
    %353 = vmatmul.mubr.bf16.gmra.mrb[0].mxu0 %v104
    %v354 = vpop.f32.mrb[0].mxu0
    %v355 = vadd.f32 0.0, %v354
    %v356 = vpop.f32.mrb[0].mxu0
    %v357 = vadd.f32 0.0, %v356
    %v358 = vpop.f32.mrb[0].mxu0
    %v359 = vadd.f32 0.0, %v358
    %v360 = vpop.f32.mrb[0].mxu0
    %v361 = vadd.f32 0.0, %v360
    %362 = vmatprep.mubr.bf16.mxu0 %v107
    %363 = vmatmul.mubr.bf16.gmra.mrb[0].mxu0 %v106
    %v364 = vpop.f32.mrb[0].mxu0
    %v365 = vadd.f32 0.0, %v364
    %v366 = vpop.f32.mrb[0].mxu0
    %v367 = vadd.f32 0.0, %v366
    %v368 = vpop.f32.mrb[0].mxu0
    %v369 = vadd.f32 0.0, %v368
    %v370 = vpop.f32.mrb[0].mxu0
    %v371 = vadd.f32 0.0, %v370
    %372 = vdwg.mxu0
    %v373 = vld [vmem:[#allocation7] sm:$0xff]
    %v374 = vld [vmem:[#allocation7 + $0x8] sm:$0xff]
    %v375 = vld [vmem:[#allocation7 + $0x10] sm:$0xff]
    %v376 = vld [vmem:[#allocation7 + $0x18] sm:$0xff]
    %v377 = vld [vmem:[#allocation7 + $0x20] sm:$0xff]
    %v378 = vld [vmem:[#allocation7 + $0x28] sm:$0xff]
    %v379 = vld [vmem:[#allocation7 + $0x30] sm:$0xff]
    %v380 = vld [vmem:[#allocation7 + $0x38] sm:$0xff]
    %v381 = vmul.f32 %v335, %v373
    %v382 = vmul.f32 %v337, %v374
    %v383 = vmul.f32 %v339, %v375
    %v384 = vmul.f32 %v341, %v376
    %v385 = vmul.f32 %v345, %v377
    %v386 = vmul.f32 %v347, %v378
    %v387 = vmul.f32 %v349, %v379
    %v388 = vmul.f32 %v351, %v380
    %v389 = vmul.f32 %v355, %v373
    %v390 = vmul.f32 %v357, %v374
    %v391 = vmul.f32 %v359, %v375
    %v392 = vmul.f32 %v361, %v376
    %v393 = vmul.f32 %v365, %v377
    %v394 = vmul.f32 %v367, %v378
    %v395 = vmul.f32 %v369, %v379
    %v396 = vmul.f32 %v371, %v380
    %v397 = vadd.f32 %v381, %v382
    %398 = vadd.xlane.f32.xlu0 %v397
    %v399 = vpop.xlane.xlu0 %398
    %v400 = vadd.f32 %v383, %v384
    %401 = vadd.xlane.f32.xlu0 %v400
    %v402 = vpop.xlane.xlu0 %401
    %v403 = vadd.f32 %v385, %v386
    %404 = vadd.xlane.f32.xlu0 %v403
    %v405 = vpop.xlane.xlu0 %404
    %v406 = vadd.f32 %v387, %v388
    %407 = vadd.xlane.f32.xlu0 %v406
    %v408 = vpop.xlane.xlu0 %407
    %v409 = vadd.f32 %v389, %v390
    %410 = vadd.xlane.f32.xlu0 %v409
    %v411 = vpop.xlane.xlu0 %410
    %v412 = vadd.f32 %v391, %v392
    %413 = vadd.xlane.f32.xlu0 %v412
    %v414 = vpop.xlane.xlu0 %413
    %v415 = vadd.f32 %v393, %v394
    %416 = vadd.xlane.f32.xlu0 %v415
    %v417 = vpop.xlane.xlu0 %416
    %v418 = vadd.f32 %v395, %v396
    %419 = vadd.xlane.f32.xlu0 %v418
    %v420 = vpop.xlane.xlu0 %419
    %v421 = vmul.f32 %v399, 0.0051020407
    %v422 = vmul.f32 %v402, 0.0051020407
    %v423 = vmul.f32 %v405, 0.0051020407
    %v424 = vmul.f32 %v408, 0.0051020407
    %v425 = vmul.f32 %v411, 0.0051020407
    %v426 = vmul.f32 %v414, 0.0051020407
    %v427 = vmul.f32 %v417, 0.0051020407
    %v428 = vmul.f32 %v420, 0.0051020407
    %v429 = vld [vmem:[#allocation8] sm:$0xff]
    %v430 = vld [vmem:[#allocation8 + $0x8] sm:$0xff]
    %v431 = vld [vmem:[#allocation8 + $0x10] sm:$0xff]
    %v432 = vld [vmem:[#allocation8 + $0x18] sm:$0xff]
    %v433 = vld [vmem:[#allocation8 + $0x20] sm:$0xff]
    %v434 = vld [vmem:[#allocation8 + $0x28] sm:$0xff]
    %v435 = vld [vmem:[#allocation8 + $0x30] sm:$0xff]
    %v436 = vld [vmem:[#allocation8 + $0x38] sm:$0xff]
    %v437 = vld [vmem:[#allocation8 + $0x40] sm:$0xff]
    %v438 = vld [vmem:[#allocation8 + $0x48] sm:$0xff]
    %v439 = vld [vmem:[#allocation8 + $0x50] sm:$0xff]
    %v440 = vld [vmem:[#allocation8 + $0x58] sm:$0xff]
    %v441 = vld [vmem:[#allocation8 + $0x60] sm:$0xff]
    %v442 = vld [vmem:[#allocation8 + $0x68] sm:$0xff]
    %v443 = vld [vmem:[#allocation8 + $0x70] sm:$0xff]
    %v444 = vld [vmem:[#allocation8 + $0x78] sm:$0xff]
    %v445 = vld [vmem:[#allocation8 + $0x80] sm:$0xff]
    %v446 = vld [vmem:[#allocation8 + $0x88] sm:$0xff]
    %v447 = vld [vmem:[#allocation8 + $0x90] sm:$0xff]
    %v448 = vld [vmem:[#allocation8 + $0x98] sm:$0xff]
    %v449 = vld [vmem:[#allocation8 + $0xa0] sm:$0xff]
    %v450 = vld [vmem:[#allocation8 + $0xa8] sm:$0xff]
    %v451 = vld [vmem:[#allocation8 + $0xb0] sm:$0xff]
    %v452 = vld [vmem:[#allocation8 + $0xb8] sm:$0xff]
    %v453 = vld [vmem:[#allocation8 + $0xc0] sm:$0xff]
    %v454 = vld [vmem:[#allocation8 + $0xc8] sm:$0xff]
    %v455 = vld [vmem:[#allocation8 + $0xd0] sm:$0xff]
    %v456 = vld [vmem:[#allocation8 + $0xd8] sm:$0xff]
    %v457 = vld [vmem:[#allocation8 + $0xe0] sm:$0xff]
    %v458 = vld [vmem:[#allocation8 + $0xe8] sm:$0xff]
    %v459 = vld [vmem:[#allocation8 + $0xf0] sm:$0xff]
    %v460 = vld [vmem:[#allocation8 + $0xf8] sm:$0xff]
    %v461 = vmul.f32 %v335, %v429
    %v462 = vmul.f32 %v337, %v430
    %v463 = vmul.f32 %v339, %v431
    %v464 = vmul.f32 %v341, %v432
    %v465 = vmul.f32 %v345, %v433
    %v466 = vmul.f32 %v347, %v434
    %v467 = vmul.f32 %v349, %v435
    %v468 = vmul.f32 %v351, %v436
    %v469 = vmul.f32 %v355, %v429
    %v470 = vmul.f32 %v357, %v430
    %v471 = vmul.f32 %v359, %v431
    %v472 = vmul.f32 %v361, %v432
    %v473 = vmul.f32 %v365, %v433
    %v474 = vmul.f32 %v367, %v434
    %v475 = vmul.f32 %v369, %v435
    %v476 = vmul.f32 %v371, %v436
    %v477 = vsel %vm82, 1, 0
    %v478 = vsel %vm83, 1, 0
    %vm479 = vcmp.eq.s32.totalorder %v477, 1
    %vm480 = vcmp.eq.s32.totalorder %v478, 1
    %v481 = vsel %vm479, %v461, -3e+38
    %v482 = vsel %vm480, %v462, -3e+38
    %v483 = vsel %vm479, %v463, -3e+38
    %v484 = vsel %vm480, %v464, -3e+38
    %v485 = vsel %vm479, %v465, -3e+38
    %v486 = vsel %vm480, %v466, -3e+38
    %v487 = vsel %vm479, %v467, -3e+38
    %v488 = vsel %vm480, %v468, -3e+38
    %v489 = vsel %vm479, %v469, -3e+38
    %v490 = vsel %vm480, %v470, -3e+38
    %v491 = vsel %vm479, %v471, -3e+38
    %v492 = vsel %vm480, %v472, -3e+38
    %v493 = vsel %vm479, %v473, -3e+38
    %v494 = vsel %vm480, %v474, -3e+38
    %v495 = vsel %vm479, %v475, -3e+38
    %v496 = vsel %vm480, %v476, -3e+38
    %v497 = vmax.f32 %v481, %v482
    %498 = vmax.xlane.f32.xlu0 %v497
    %v499 = vpop.xlane.xlu0 %498
    %v500 = vmax.f32 %v483, %v484
    %501 = vmax.xlane.f32.xlu0 %v500
    %v502 = vpop.xlane.xlu0 %501
    %v503 = vmax.f32 %v485, %v486
    %504 = vmax.xlane.f32.xlu0 %v503
    %v505 = vpop.xlane.xlu0 %504
    %v506 = vmax.f32 %v487, %v488
    %507 = vmax.xlane.f32.xlu0 %v506
    %v508 = vpop.xlane.xlu0 %507
    %v509 = vmax.f32 %v489, %v490
    %510 = vmax.xlane.f32.xlu0 %v509
    %v511 = vpop.xlane.xlu0 %510
    %v512 = vmax.f32 %v491, %v492
    %513 = vmax.xlane.f32.xlu0 %v512
    %v514 = vpop.xlane.xlu0 %513
    %v515 = vmax.f32 %v493, %v494
    %516 = vmax.xlane.f32.xlu0 %v515
    %v517 = vpop.xlane.xlu0 %516
    %v518 = vmax.f32 %v495, %v496
    %519 = vmax.xlane.f32.xlu0 %v518
    %v520 = vpop.xlane.xlu0 %519
    %v521 = vadd.f32 %v499, 0.0
    %v522 = vadd.f32 %v502, 0.0
    %v523 = vadd.f32 %v505, 0.0
    %v524 = vadd.f32 %v508, 0.0
    %v525 = vadd.f32 %v511, 0.0
    %v526 = vadd.f32 %v514, 0.0
    %v527 = vadd.f32 %v517, 0.0
    %v528 = vadd.f32 %v520, 0.0
    %v529 = vsel %vm479, %v461, 3e+38
    %v530 = vsel %vm480, %v462, 3e+38
    %v531 = vsel %vm479, %v463, 3e+38
    %v532 = vsel %vm480, %v464, 3e+38
    %v533 = vsel %vm479, %v465, 3e+38
    %v534 = vsel %vm480, %v466, 3e+38
    %v535 = vsel %vm479, %v467, 3e+38
    %v536 = vsel %vm480, %v468, 3e+38
    %v537 = vsel %vm479, %v469, 3e+38
    %v538 = vsel %vm480, %v470, 3e+38
    %v539 = vsel %vm479, %v471, 3e+38
    %v540 = vsel %vm480, %v472, 3e+38
    %v541 = vsel %vm479, %v473, 3e+38
    %v542 = vsel %vm480, %v474, 3e+38
    %v543 = vsel %vm479, %v475, 3e+38
    %v544 = vsel %vm480, %v476, 3e+38
    %v545 = vmin.f32 %v529, %v530
    %546 = vmin.xlane.f32.xlu0 %v545
    %v547 = vpop.xlane.xlu0 %546
    %v548 = vmin.f32 %v531, %v532
    %549 = vmin.xlane.f32.xlu0 %v548
    %v550 = vpop.xlane.xlu0 %549
    %v551 = vmin.f32 %v533, %v534
    %552 = vmin.xlane.f32.xlu0 %v551
    %v553 = vpop.xlane.xlu0 %552
    %v554 = vmin.f32 %v535, %v536
    %555 = vmin.xlane.f32.xlu0 %v554
    %v556 = vpop.xlane.xlu0 %555
    %v557 = vmin.f32 %v537, %v538
    %558 = vmin.xlane.f32.xlu0 %v557
    %v559 = vpop.xlane.xlu0 %558
    %v560 = vmin.f32 %v539, %v540
    %561 = vmin.xlane.f32.xlu0 %v560
    %v562 = vpop.xlane.xlu0 %561
    %v563 = vmin.f32 %v541, %v542
    %564 = vmin.xlane.f32.xlu0 %v563
    %v565 = vpop.xlane.xlu0 %564
    %v566 = vmin.f32 %v543, %v544
    %567 = vmin.xlane.f32.xlu0 %v566
    %v568 = vpop.xlane.xlu0 %567
    %v569 = vadd.f32 %v547, 0.0
    %v570 = vadd.f32 %v550, 0.0
    %v571 = vadd.f32 %v553, 0.0
    %v572 = vadd.f32 %v556, 0.0
    %v573 = vadd.f32 %v559, 0.0
    %v574 = vadd.f32 %v562, 0.0
    %v575 = vadd.f32 %v565, 0.0
    %v576 = vadd.f32 %v568, 0.0
    %v577 = vmul.f32 %v335, %v437
    %v578 = vmul.f32 %v337, %v438
    %v579 = vmul.f32 %v339, %v439
    %v580 = vmul.f32 %v341, %v440
    %v581 = vmul.f32 %v345, %v441
    %v582 = vmul.f32 %v347, %v442
    %v583 = vmul.f32 %v349, %v443
    %v584 = vmul.f32 %v351, %v444
    %v585 = vmul.f32 %v355, %v437
    %v586 = vmul.f32 %v357, %v438
    %v587 = vmul.f32 %v359, %v439
    %v588 = vmul.f32 %v361, %v440
    %v589 = vmul.f32 %v365, %v441
    %v590 = vmul.f32 %v367, %v442
    %v591 = vmul.f32 %v369, %v443
    %v592 = vmul.f32 %v371, %v444
    %v593 = vsel %vm479, %v577, -3e+38
    %v594 = vsel %vm480, %v578, -3e+38
    %v595 = vsel %vm479, %v579, -3e+38
    %v596 = vsel %vm480, %v580, -3e+38
    %v597 = vsel %vm479, %v581, -3e+38
    %v598 = vsel %vm480, %v582, -3e+38
    %v599 = vsel %vm479, %v583, -3e+38
    %v600 = vsel %vm480, %v584, -3e+38
    %v601 = vsel %vm479, %v585, -3e+38
    %v602 = vsel %vm480, %v586, -3e+38
    %v603 = vsel %vm479, %v587, -3e+38
    %v604 = vsel %vm480, %v588, -3e+38
    %v605 = vsel %vm479, %v589, -3e+38
    %v606 = vsel %vm480, %v590, -3e+38
    %v607 = vsel %vm479, %v591, -3e+38
    %v608 = vsel %vm480, %v592, -3e+38
    %v609 = vmax.f32 %v593, %v594
    %610 = vmax.xlane.f32.xlu0 %v609
    %v611 = vpop.xlane.xlu0 %610
    %v612 = vmax.f32 %v595, %v596
    %613 = vmax.xlane.f32.xlu0 %v612
    %v614 = vpop.xlane.xlu0 %613
    %v615 = vmax.f32 %v597, %v598
    %616 = vmax.xlane.f32.xlu0 %v615
    %v617 = vpop.xlane.xlu0 %616
    %v618 = vmax.f32 %v599, %v600
    %619 = vmax.xlane.f32.xlu0 %v618
    %v620 = vpop.xlane.xlu0 %619
    %v621 = vmax.f32 %v601, %v602
    %622 = vmax.xlane.f32.xlu0 %v621
    %v623 = vpop.xlane.xlu0 %622
    %v624 = vmax.f32 %v603, %v604
    %625 = vmax.xlane.f32.xlu0 %v624
    %v626 = vpop.xlane.xlu0 %625
    %v627 = vmax.f32 %v605, %v606
    %628 = vmax.xlane.f32.xlu0 %v627
    %v629 = vpop.xlane.xlu0 %628
    %v630 = vmax.f32 %v607, %v608
    %631 = vmax.xlane.f32.xlu0 %v630
    %v632 = vpop.xlane.xlu0 %631
    %v633 = vadd.f32 %v521, %v611
    %v634 = vadd.f32 %v522, %v614
    %v635 = vadd.f32 %v523, %v617
    %v636 = vadd.f32 %v524, %v620
    %v637 = vadd.f32 %v525, %v623
    %v638 = vadd.f32 %v526, %v626
    %v639 = vadd.f32 %v527, %v629
    %v640 = vadd.f32 %v528, %v632
    %v641 = vsel %vm479, %v577, 3e+38
    %v642 = vsel %vm480, %v578, 3e+38
    %v643 = vsel %vm479, %v579, 3e+38
    %v644 = vsel %vm480, %v580, 3e+38
    %v645 = vsel %vm479, %v581, 3e+38
    %v646 = vsel %vm480, %v582, 3e+38
    %v647 = vsel %vm479, %v583, 3e+38
    %v648 = vsel %vm480, %v584, 3e+38
    %v649 = vsel %vm479, %v585, 3e+38
    %v650 = vsel %vm480, %v586, 3e+38
    %v651 = vsel %vm479, %v587, 3e+38
    %v652 = vsel %vm480, %v588, 3e+38
    %v653 = vsel %vm479, %v589, 3e+38
    %v654 = vsel %vm480, %v590, 3e+38
    %v655 = vsel %vm479, %v591, 3e+38
    %v656 = vsel %vm480, %v592, 3e+38
    %v657 = vmin.f32 %v641, %v642
    %658 = vmin.xlane.f32.xlu0 %v657
    %v659 = vpop.xlane.xlu0 %658
    %v660 = vmin.f32 %v643, %v644
    %661 = vmin.xlane.f32.xlu0 %v660
    %v662 = vpop.xlane.xlu0 %661
    %v663 = vmin.f32 %v645, %v646
    %664 = vmin.xlane.f32.xlu0 %v663
    %v665 = vpop.xlane.xlu0 %664
    %v666 = vmin.f32 %v647, %v648
    %667 = vmin.xlane.f32.xlu0 %v666
    %v668 = vpop.xlane.xlu0 %667
    %v669 = vmin.f32 %v649, %v650
    %670 = vmin.xlane.f32.xlu0 %v669
    %v671 = vpop.xlane.xlu0 %670
    %v672 = vmin.f32 %v651, %v652
    %673 = vmin.xlane.f32.xlu0 %v672
    %v674 = vpop.xlane.xlu0 %673
    %v675 = vmin.f32 %v653, %v654
    %676 = vmin.xlane.f32.xlu0 %v675
    %v677 = vpop.xlane.xlu0 %676
    %v678 = vmin.f32 %v655, %v656
    %679 = vmin.xlane.f32.xlu0 %v678
    %v680 = vpop.xlane.xlu0 %679
    %v681 = vadd.f32 %v569, %v659
    %v682 = vadd.f32 %v570, %v662
    %v683 = vadd.f32 %v571, %v665
    %v684 = vadd.f32 %v572, %v668
    %v685 = vadd.f32 %v573, %v671
    %v686 = vadd.f32 %v574, %v674
    %v687 = vadd.f32 %v575, %v677
    %v688 = vadd.f32 %v576, %v680
    %v689 = vmul.f32 %v335, %v445
    %v690 = vmul.f32 %v337, %v446
    %v691 = vmul.f32 %v339, %v447
    %v692 = vmul.f32 %v341, %v448
    %v693 = vmul.f32 %v345, %v449
    %v694 = vmul.f32 %v347, %v450
    %v695 = vmul.f32 %v349, %v451
    %v696 = vmul.f32 %v351, %v452
    %v697 = vmul.f32 %v355, %v445
    %v698 = vmul.f32 %v357, %v446
    %v699 = vmul.f32 %v359, %v447
    %v700 = vmul.f32 %v361, %v448
    %v701 = vmul.f32 %v365, %v449
    %v702 = vmul.f32 %v367, %v450
    %v703 = vmul.f32 %v369, %v451
    %v704 = vmul.f32 %v371, %v452
    %v705 = vsel %vm479, %v689, -3e+38
    %v706 = vsel %vm480, %v690, -3e+38
    %v707 = vsel %vm479, %v691, -3e+38
    %v708 = vsel %vm480, %v692, -3e+38
    %v709 = vsel %vm479, %v693, -3e+38
    %v710 = vsel %vm480, %v694, -3e+38
    %v711 = vsel %vm479, %v695, -3e+38
    %v712 = vsel %vm480, %v696, -3e+38
    %v713 = vsel %vm479, %v697, -3e+38
    %v714 = vsel %vm480, %v698, -3e+38
    %v715 = vsel %vm479, %v699, -3e+38
    %v716 = vsel %vm480, %v700, -3e+38
    %v717 = vsel %vm479, %v701, -3e+38
    %v718 = vsel %vm480, %v702, -3e+38
    %v719 = vsel %vm479, %v703, -3e+38
    %v720 = vsel %vm480, %v704, -3e+38
    %v721 = vmax.f32 %v705, %v706
    %722 = vmax.xlane.f32.xlu0 %v721
    %v723 = vpop.xlane.xlu0 %722
    %v724 = vmax.f32 %v707, %v708
    %725 = vmax.xlane.f32.xlu0 %v724
    %v726 = vpop.xlane.xlu0 %725
    %v727 = vmax.f32 %v709, %v710
    %728 = vmax.xlane.f32.xlu0 %v727
    %v729 = vpop.xlane.xlu0 %728
    %v730 = vmax.f32 %v711, %v712
    %731 = vmax.xlane.f32.xlu0 %v730
    %v732 = vpop.xlane.xlu0 %731
    %v733 = vmax.f32 %v713, %v714
    %734 = vmax.xlane.f32.xlu0 %v733
    %v735 = vpop.xlane.xlu0 %734
    %v736 = vmax.f32 %v715, %v716
    %737 = vmax.xlane.f32.xlu0 %v736
    %v738 = vpop.xlane.xlu0 %737
    %v739 = vmax.f32 %v717, %v718
    %740 = vmax.xlane.f32.xlu0 %v739
    %v741 = vpop.xlane.xlu0 %740
    %v742 = vmax.f32 %v719, %v720
    %743 = vmax.xlane.f32.xlu0 %v742
    %v744 = vpop.xlane.xlu0 %743
    %v745 = vadd.f32 %v633, %v723
    %v746 = vadd.f32 %v634, %v726
    %v747 = vadd.f32 %v635, %v729
    %v748 = vadd.f32 %v636, %v732
    %v749 = vadd.f32 %v637, %v735
    %v750 = vadd.f32 %v638, %v738
    %v751 = vadd.f32 %v639, %v741
    %v752 = vadd.f32 %v640, %v744
    %v753 = vsel %vm479, %v689, 3e+38
    %v754 = vsel %vm480, %v690, 3e+38
    %v755 = vsel %vm479, %v691, 3e+38
    %v756 = vsel %vm480, %v692, 3e+38
    %v757 = vsel %vm479, %v693, 3e+38
    %v758 = vsel %vm480, %v694, 3e+38
    %v759 = vsel %vm479, %v695, 3e+38
    %v760 = vsel %vm480, %v696, 3e+38
    %v761 = vsel %vm479, %v697, 3e+38
    %v762 = vsel %vm480, %v698, 3e+38
    %v763 = vsel %vm479, %v699, 3e+38
    %v764 = vsel %vm480, %v700, 3e+38
    %v765 = vsel %vm479, %v701, 3e+38
    %v766 = vsel %vm480, %v702, 3e+38
    %v767 = vsel %vm479, %v703, 3e+38
    %v768 = vsel %vm480, %v704, 3e+38
    %v769 = vmin.f32 %v753, %v754
    %770 = vmin.xlane.f32.xlu0 %v769
    %v771 = vpop.xlane.xlu0 %770
    %v772 = vmin.f32 %v755, %v756
    %773 = vmin.xlane.f32.xlu0 %v772
    %v774 = vpop.xlane.xlu0 %773
    %v775 = vmin.f32 %v757, %v758
    %776 = vmin.xlane.f32.xlu0 %v775
    %v777 = vpop.xlane.xlu0 %776
    %v778 = vmin.f32 %v759, %v760
    %779 = vmin.xlane.f32.xlu0 %v778
    %v780 = vpop.xlane.xlu0 %779
    %v781 = vmin.f32 %v761, %v762
    %782 = vmin.xlane.f32.xlu0 %v781
    %v783 = vpop.xlane.xlu0 %782
    %v784 = vmin.f32 %v763, %v764
    %785 = vmin.xlane.f32.xlu0 %v784
    %v786 = vpop.xlane.xlu0 %785
    %v787 = vmin.f32 %v765, %v766
    %788 = vmin.xlane.f32.xlu0 %v787
    %v789 = vpop.xlane.xlu0 %788
    %v790 = vmin.f32 %v767, %v768
    %791 = vmin.xlane.f32.xlu0 %v790
    %v792 = vpop.xlane.xlu0 %791
    %v793 = vadd.f32 %v681, %v771
    %v794 = vadd.f32 %v682, %v774
    %v795 = vadd.f32 %v683, %v777
    %v796 = vadd.f32 %v684, %v780
    %v797 = vadd.f32 %v685, %v783
    %v798 = vadd.f32 %v686, %v786
    %v799 = vadd.f32 %v687, %v789
    %v800 = vadd.f32 %v688, %v792
    %v801 = vmul.f32 %v335, %v453
    %v802 = vmul.f32 %v337, %v454
    %v803 = vmul.f32 %v339, %v455
    %v804 = vmul.f32 %v341, %v456
    %v805 = vmul.f32 %v345, %v457
    %v806 = vmul.f32 %v347, %v458
    %v807 = vmul.f32 %v349, %v459
    %v808 = vmul.f32 %v351, %v460
    %v809 = vmul.f32 %v355, %v453
    %v810 = vmul.f32 %v357, %v454
    %v811 = vmul.f32 %v359, %v455
    %v812 = vmul.f32 %v361, %v456
    %v813 = vmul.f32 %v365, %v457
    %v814 = vmul.f32 %v367, %v458
    %v815 = vmul.f32 %v369, %v459
    %v816 = vmul.f32 %v371, %v460
    %v817 = vsel %vm479, %v801, -3e+38
    %v818 = vsel %vm480, %v802, -3e+38
    %v819 = vsel %vm479, %v803, -3e+38
    %v820 = vsel %vm480, %v804, -3e+38
    %v821 = vsel %vm479, %v805, -3e+38
    %v822 = vsel %vm480, %v806, -3e+38
    %v823 = vsel %vm479, %v807, -3e+38
    %v824 = vsel %vm480, %v808, -3e+38
    %v825 = vsel %vm479, %v809, -3e+38
    %v826 = vsel %vm480, %v810, -3e+38
    %v827 = vsel %vm479, %v811, -3e+38
    %v828 = vsel %vm480, %v812, -3e+38
    %v829 = vsel %vm479, %v813, -3e+38
    %v830 = vsel %vm480, %v814, -3e+38
    %v831 = vsel %vm479, %v815, -3e+38
    %v832 = vsel %vm480, %v816, -3e+38
    %v833 = vmax.f32 %v817, %v818
    %834 = vmax.xlane.f32.xlu0 %v833
    %v835 = vpop.xlane.xlu0 %834
    %v836 = vmax.f32 %v819, %v820
    %837 = vmax.xlane.f32.xlu0 %v836
    %v838 = vpop.xlane.xlu0 %837
    %v839 = vmax.f32 %v821, %v822
    %840 = vmax.xlane.f32.xlu0 %v839
    %v841 = vpop.xlane.xlu0 %840
    %v842 = vmax.f32 %v823, %v824
    %843 = vmax.xlane.f32.xlu0 %v842
    %v844 = vpop.xlane.xlu0 %843
    %v845 = vmax.f32 %v825, %v826
    %846 = vmax.xlane.f32.xlu0 %v845
    %v847 = vpop.xlane.xlu0 %846
    %v848 = vmax.f32 %v827, %v828
    %849 = vmax.xlane.f32.xlu0 %v848
    %v850 = vpop.xlane.xlu0 %849
    %v851 = vmax.f32 %v829, %v830
    %852 = vmax.xlane.f32.xlu0 %v851
    %v853 = vpop.xlane.xlu0 %852
    %v854 = vmax.f32 %v831, %v832
    %855 = vmax.xlane.f32.xlu0 %v854
    %v856 = vpop.xlane.xlu0 %855
    %v857 = vadd.f32 %v745, %v835
    %v858 = vadd.f32 %v746, %v838
    %v859 = vadd.f32 %v747, %v841
    %v860 = vadd.f32 %v748, %v844
    %v861 = vadd.f32 %v749, %v847
    %v862 = vadd.f32 %v750, %v850
    %v863 = vadd.f32 %v751, %v853
    %v864 = vadd.f32 %v752, %v856
    %v865 = vsel %vm479, %v801, 3e+38
    %v866 = vsel %vm480, %v802, 3e+38
    %v867 = vsel %vm479, %v803, 3e+38
    %v868 = vsel %vm480, %v804, 3e+38
    %v869 = vsel %vm479, %v805, 3e+38
    %v870 = vsel %vm480, %v806, 3e+38
    %v871 = vsel %vm479, %v807, 3e+38
    %v872 = vsel %vm480, %v808, 3e+38
    %v873 = vsel %vm479, %v809, 3e+38
    %v874 = vsel %vm480, %v810, 3e+38
    %v875 = vsel %vm479, %v811, 3e+38
    %v876 = vsel %vm480, %v812, 3e+38
    %v877 = vsel %vm479, %v813, 3e+38
    %v878 = vsel %vm480, %v814, 3e+38
    %v879 = vsel %vm479, %v815, 3e+38
    %v880 = vsel %vm480, %v816, 3e+38
    %v881 = vmin.f32 %v865, %v866
    %882 = vmin.xlane.f32.xlu0 %v881
    %v883 = vpop.xlane.xlu0 %882
    %v884 = vmin.f32 %v867, %v868
    %885 = vmin.xlane.f32.xlu0 %v884
    %v886 = vpop.xlane.xlu0 %885
    %v887 = vmin.f32 %v869, %v870
    %888 = vmin.xlane.f32.xlu0 %v887
    %v889 = vpop.xlane.xlu0 %888
    %v890 = vmin.f32 %v871, %v872
    %891 = vmin.xlane.f32.xlu0 %v890
    %v892 = vpop.xlane.xlu0 %891
    %v893 = vmin.f32 %v873, %v874
    %894 = vmin.xlane.f32.xlu0 %v893
    %v895 = vpop.xlane.xlu0 %894
    %v896 = vmin.f32 %v875, %v876
    %897 = vmin.xlane.f32.xlu0 %v896
    %v898 = vpop.xlane.xlu0 %897
    %v899 = vmin.f32 %v877, %v878
    %900 = vmin.xlane.f32.xlu0 %v899
    %v901 = vpop.xlane.xlu0 %900
    %v902 = vmin.f32 %v879, %v880
    %903 = vmin.xlane.f32.xlu0 %v902
    %v904 = vpop.xlane.xlu0 %903
    %v905 = vadd.f32 %v793, %v883
    %v906 = vadd.f32 %v794, %v886
    %v907 = vadd.f32 %v795, %v889
    %v908 = vadd.f32 %v796, %v892
    %v909 = vadd.f32 %v797, %v895
    %v910 = vadd.f32 %v798, %v898
    %v911 = vadd.f32 %v799, %v901
    %v912 = vadd.f32 %v800, %v904
    %v921 = vlaneseq
    %v922 = vshrl.u32 %v921, 7
    %v923 = vsub.s32 %v80, %v922
    %v924 = vrot.slane %v421, %v923
    %v925 = vadd.s32 %v80, 4294967288
    %v926 = vlaneseq
    %v927 = vshrl.u32 %v926, 7
    %v928 = vsub.s32 %v925, %v927
    %v929 = vrot.slane %v422, %v928
    %vm930 = vcmask 130112
    %v931 = vsel %vm930, %v929, %v924
    %v932 = vadd.s32 %v80, 4294967280
    %v933 = vlaneseq
    %v934 = vshrl.u32 %v933, 7
    %v935 = vsub.s32 %v932, %v934
    %v936 = vrot.slane %v423, %v935
    %vm937 = vcmask 195712
    %v938 = vsel %vm937, %v936, %v931
    %v939 = vadd.s32 %v80, 4294967272
    %v940 = vlaneseq
    %v941 = vshrl.u32 %v940, 7
    %v942 = vsub.s32 %v939, %v941
    %v943 = vrot.slane %v424, %v942
    %vm944 = vcmask 261312
    %v945 = vsel %vm944, %v943, %v938
    %v946 = vlaneseq
    %v947 = vshrl.u32 %v946, 7
    %v948 = vsub.s32 %v80, %v947
    %v949 = vrot.slane %v425, %v948
    %v950 = vlaneseq
    %v951 = vshrl.u32 %v950, 7
    %v952 = vsub.s32 %v925, %v951
    %v953 = vrot.slane %v426, %v952
    %v954 = vsel %vm930, %v953, %v949
    %v955 = vlaneseq
    %v956 = vshrl.u32 %v955, 7
    %v957 = vsub.s32 %v932, %v956
    %v958 = vrot.slane %v427, %v957
    %v959 = vsel %vm937, %v958, %v954
    %v960 = vlaneseq
    %v961 = vshrl.u32 %v960, 7
    %v962 = vsub.s32 %v939, %v961
    %v963 = vrot.slane %v428, %v962
    %v964 = vsel %vm944, %v963, %v959
    %vm965 = vcmask 1041409
    %v966 = vsel %vm965, %v964, %v945
    %v976 = vlaneseq
    %v977 = vshrl.u32 %v976, 7
    %v978 = vsub.s32 %v80, %v977
    %v979 = vrot.slane %v857, %v978
    %v980 = vlaneseq
    %v981 = vshrl.u32 %v980, 7
    %v982 = vsub.s32 %v925, %v981
    %v983 = vrot.slane %v858, %v982
    %v984 = vsel %vm930, %v983, %v979
    %v985 = vlaneseq
    %v986 = vshrl.u32 %v985, 7
    %v987 = vsub.s32 %v932, %v986
    %v988 = vrot.slane %v859, %v987
    %v989 = vsel %vm937, %v988, %v984
    %v990 = vlaneseq
    %v991 = vshrl.u32 %v990, 7
    %v992 = vsub.s32 %v939, %v991
    %v993 = vrot.slane %v860, %v992
    %v994 = vsel %vm944, %v993, %v989
    %v995 = vlaneseq
    %v996 = vshrl.u32 %v995, 7
    %v997 = vsub.s32 %v80, %v996
    %v998 = vrot.slane %v861, %v997
    %v999 = vlaneseq
    %v1000 = vshrl.u32 %v999, 7
    %v1001 = vsub.s32 %v925, %v1000
    %v1002 = vrot.slane %v862, %v1001
    %v1003 = vsel %vm930, %v1002, %v998
    %v1004 = vlaneseq
    %v1005 = vshrl.u32 %v1004, 7
    %v1006 = vsub.s32 %v932, %v1005
    %v1007 = vrot.slane %v863, %v1006
    %v1008 = vsel %vm937, %v1007, %v1003
    %v1009 = vlaneseq
    %v1010 = vshrl.u32 %v1009, 7
    %v1011 = vsub.s32 %v939, %v1010
    %v1012 = vrot.slane %v864, %v1011
    %v1013 = vsel %vm944, %v1012, %v1008
    %vm1014 = vcmask 1043459
    %v1015 = vsel %vm1014, %v1013, %v994
    %v1025 = vlaneseq
    %v1026 = vshrl.u32 %v1025, 7
    %v1027 = vsub.s32 %v80, %v1026
    %v1028 = vrot.slane %v905, %v1027
    %v1029 = vlaneseq
    %v1030 = vshrl.u32 %v1029, 7
    %v1031 = vsub.s32 %v925, %v1030
    %v1032 = vrot.slane %v906, %v1031
    %v1033 = vsel %vm930, %v1032, %v1028
    %v1034 = vlaneseq
    %v1035 = vshrl.u32 %v1034, 7
    %v1036 = vsub.s32 %v932, %v1035
    %v1037 = vrot.slane %v907, %v1036
    %v1038 = vsel %vm937, %v1037, %v1033
    %v1039 = vlaneseq
    %v1040 = vshrl.u32 %v1039, 7
    %v1041 = vsub.s32 %v939, %v1040
    %v1042 = vrot.slane %v908, %v1041
    %v1043 = vsel %vm944, %v1042, %v1038
    %v1044 = vlaneseq
    %v1045 = vshrl.u32 %v1044, 7
    %v1046 = vsub.s32 %v80, %v1045
    %v1047 = vrot.slane %v909, %v1046
    %v1048 = vlaneseq
    %v1049 = vshrl.u32 %v1048, 7
    %v1050 = vsub.s32 %v925, %v1049
    %v1051 = vrot.slane %v910, %v1050
    %v1052 = vsel %vm930, %v1051, %v1047
    %v1053 = vlaneseq
    %v1054 = vshrl.u32 %v1053, 7
    %v1055 = vsub.s32 %v932, %v1054
    %v1056 = vrot.slane %v911, %v1055
    %v1057 = vsel %vm937, %v1056, %v1052
    %v1058 = vlaneseq
    %v1059 = vshrl.u32 %v1058, 7
    %v1060 = vsub.s32 %v939, %v1059
    %v1061 = vrot.slane %v912, %v1060
    %v1062 = vsel %vm944, %v1061, %v1057
    %vm1063 = vcmask 1045509
    %v1064 = vsel %vm1063, %v1062, %v1043
    %vm1066 = vcmask 1041408
    %v1067 = vsel %vm1066, %v966, %v1015
    %vm1068 = vcmask 1043456
    %v1069 = vsel %vm1068, %v1067, %v1064
    %v1070 = vmul.f32 %v1069, 0.25
    %v1071 = vld [vmem:[%s4] sm:$0xff]
    %v1072 = vld [vmem:[%s4 + $0x8] sm:$0xff]
    %v1073 = vld [vmem:[%s4 + $0x10] sm:$0xff]
    %v1074 = vld [vmem:[%s4 + $0x18] sm:$0xff]
    %vm1075 = vcmask 261120
    %v1077 = vsel %vm1075, %v1070, 0
    %1079 = vmatprep.subr.mxu0 0.0
    %1080 = vmatpush1.msra.mxu0 %v1071
    %1081 = vmatprep.subr.mxu0 0.0
    %1082 = vmatpush1.msra.mxu0 %v1072
    %1083 = vmatprep.subr.mxu0 0.0
    %1084 = vmatpush1.msra.mxu0 %v1073
    %1085 = vmatprep.subr.mxu0 0.0
    %1086 = vmatpush1.msra.mxu0 %v1074
    %1087 = vmatprep.subr.mxu0 0.0
    %1088 = vmatpush1.msra.mxu0 0.0
    %1089 = vmatprep.subr.mxu0 0.0
    %1090 = vmatpush1.msra.mxu0 0.0
    %1091 = vmatprep.subr.mxu0 0.0
    %1092 = vmatpush1.msra.mxu0 0.0
    %1093 = vmatprep.subr.mxu0 0.0
    %1094 = vmatpush1.msra.mxu0 0.0
    %1095 = vmatprep.subr.mxu0 0.0
    %1096 = vmatpush1.msra.mxu0 0.0
    %1097 = vmatprep.subr.mxu0 0.0
    %1098 = vmatpush1.msra.mxu0 0.0
    %1099 = vmatprep.subr.mxu0 0.0
    %1100 = vmatpush1.msra.mxu0 0.0
    %1101 = vmatprep.subr.mxu0 0.0
    %1102 = vmatpush1.msra.mxu0 0.0
    %1103 = vmatprep.subr.mxu0 0.0
    %1104 = vmatpush1.msra.mxu0 0.0
    %1105 = vmatprep.subr.mxu0 0.0
    %1106 = vmatpush1.msra.mxu0 0.0
    %1107 = vmatprep.subr.mxu0 0.0
    %1108 = vmatpush1.msra.mxu0 0.0
    %1109 = vmatprep.subr.mxu0 0.0
    %1110 = vmatpush1.msra.mxu0 0.0
    %1111 = vmatprep.subr.mxu0 0.0
    %1112 = vmatpush1.msra.mxu0 0.0
    %1113 = vmatprep.subr.mxu0 0.0
    %1114 = vmatpush1.msra.mxu0 0.0
    %1115 = vmatprep.subr.mxu0 0.0
    %1116 = vmatpush1.msra.mxu0 0.0
    %1117 = vmatprep.subr.mxu0 0.0
    %1118 = vmatpush1.msra.mxu0 0.0
    %1119 = vmatprep.subr.mxu0 0.0
    %1120 = vmatpush1.msra.mxu0 0.0
    %1121 = vmatprep.subr.mxu0 0.0
    %1122 = vmatpush1.msra.mxu0 0.0
    %1123 = vmatprep.subr.mxu0 0.0
    %1124 = vmatpush1.msra.mxu0 0.0
    %1125 = vmatprep.subr.mxu0 0.0
    %1126 = vmatpush1.msra.mxu0 0.0
    %1127 = vmatprep.subr.mxu0 0.0
    %1128 = vmatpush1.msra.mxu0 0.0
    %1129 = vmatprep.subr.mxu0 0.0
    %1130 = vmatpush1.msra.mxu0 0.0
    %1131 = vmatprep.subr.mxu0 0.0
    %1132 = vmatpush1.msra.mxu0 0.0
    %1133 = vmatprep.subr.mxu0 0.0
    %1134 = vmatpush1.msra.mxu0 0.0
    %1135 = vmatprep.subr.mxu0 0.0
    %1136 = vmatpush1.msra.mxu0 0.0
    %1137 = vmatprep.subr.mxu0 0.0
    %1138 = vmatpush1.msra.mxu0 0.0
    %1139 = vmatprep.subr.mxu0 0.0
    %1140 = vmatpush1.msra.mxu0 0.0
    %1141 = vmatprep.subr.mxu0 0.0
    %1142 = vmatpush1.msra.mxu0 0.0
    %1143 = vmatprep.mubr.f32.mxu0 0.0
    %1144 = vmatmul.mubr.f32.gmra.mrb[0].mxu0 %v1077
    %v1145 = vpop.f32.mrb[0].mxu0
    %v1146 = vadd.f32 0.0, %v1145
    %v1147 = vpop.f32.mrb[0].mxu0
    %1148 = vdwg.mxu0
    %v1149 = vmax.f32 %v1146, 0.0
    %v1150 = vld [vmem:[%s5] sm:$0xf]
    %vm1151 = vcmask 31744
    %v1153 = vsel %vm1151, %v1149, 0
    %v1156 = vsel %vm1068, %v1150, 0
    %1158 = vmatprep.subr.mxu0 0.0
    %1159 = vmatpush1.msra.mxu0 %v1156
    %1160 = vmatprep.subr.mxu0 0.0
    %1161 = vmatpush1.msra.mxu0 0.0
    %1162 = vmatprep.subr.mxu0 0.0
    %1163 = vmatpush1.msra.mxu0 0.0
    %1164 = vmatprep.subr.mxu0 0.0
    %1165 = vmatpush1.msra.mxu0 0.0
    %1166 = vmatprep.subr.mxu0 0.0
    %1167 = vmatpush1.msra.mxu0 0.0
    %1168 = vmatprep.subr.mxu0 0.0
    %1169 = vmatpush1.msra.mxu0 0.0
    %1170 = vmatprep.subr.mxu0 0.0
    %1171 = vmatpush1.msra.mxu0 0.0
    %1172 = vmatprep.subr.mxu0 0.0
    %1173 = vmatpush1.msra.mxu0 0.0
    %1174 = vmatprep.subr.mxu0 0.0
    %1175 = vmatpush1.msra.mxu0 0.0
    %1176 = vmatprep.subr.mxu0 0.0
    %1177 = vmatpush1.msra.mxu0 0.0
    %1178 = vmatprep.subr.mxu0 0.0
    %1179 = vmatpush1.msra.mxu0 0.0
    %1180 = vmatprep.subr.mxu0 0.0
    %1181 = vmatpush1.msra.mxu0 0.0
    %1182 = vmatprep.subr.mxu0 0.0
    %1183 = vmatpush1.msra.mxu0 0.0
    %1184 = vmatprep.subr.mxu0 0.0
    %1185 = vmatpush1.msra.mxu0 0.0
    %1186 = vmatprep.subr.mxu0 0.0
    %1187 = vmatpush1.msra.mxu0 0.0
    %1188 = vmatprep.subr.mxu0 0.0
    %1189 = vmatpush1.msra.mxu0 0.0
    %1190 = vmatprep.subr.mxu0 0.0
    %1191 = vmatpush1.msra.mxu0 0.0
    %1192 = vmatprep.subr.mxu0 0.0
    %1193 = vmatpush1.msra.mxu0 0.0
    %1194 = vmatprep.subr.mxu0 0.0
    %1195 = vmatpush1.msra.mxu0 0.0
    %1196 = vmatprep.subr.mxu0 0.0
    %1197 = vmatpush1.msra.mxu0 0.0
    %1198 = vmatprep.subr.mxu0 0.0
    %1199 = vmatpush1.msra.mxu0 0.0
    %1200 = vmatprep.subr.mxu0 0.0
    %1201 = vmatpush1.msra.mxu0 0.0
    %1202 = vmatprep.subr.mxu0 0.0
    %1203 = vmatpush1.msra.mxu0 0.0
    %1204 = vmatprep.subr.mxu0 0.0
    %1205 = vmatpush1.msra.mxu0 0.0
    %1206 = vmatprep.subr.mxu0 0.0
    %1207 = vmatpush1.msra.mxu0 0.0
    %1208 = vmatprep.subr.mxu0 0.0
    %1209 = vmatpush1.msra.mxu0 0.0
    %1210 = vmatprep.subr.mxu0 0.0
    %1211 = vmatpush1.msra.mxu0 0.0
    %1212 = vmatprep.subr.mxu0 0.0
    %1213 = vmatpush1.msra.mxu0 0.0
    %1214 = vmatprep.subr.mxu0 0.0
    %1215 = vmatpush1.msra.mxu0 0.0
    %1216 = vmatprep.subr.mxu0 0.0
    %1217 = vmatpush1.msra.mxu0 0.0
    %1218 = vmatprep.subr.mxu0 0.0
    %1219 = vmatpush1.msra.mxu0 0.0
    %1220 = vmatprep.subr.mxu0 0.0
    %1221 = vmatpush1.msra.mxu0 0.0
    %1222 = vmatprep.mubr.f32.mxu0 0.0
    %1223 = vmatmul.mubr.f32.gmra.mrb[0].mxu0 %v1153
    %v1224 = vpop.f32.mrb[0].mxu0
    %v1225 = vadd.f32 0.0, %v1224
    %v1226 = vpop.f32.mrb[0].mxu0
    %1227 = vdwg.mxu0
    %v1229 = vcombine.high %v1225, %v1225
    %v1231 = vunpack.c.l.s4 1983009808
    %v1232 = vunpack.c.0.s8 %v1231
    %v1233 = vlaneseq
    %v1234 = vshrl.u32 %v1233, 7
    %v1235 = vsub.s32 %v1232, %v1234
    %v1236 = vrot.slane %v1225, %v1235
    %v1238 = vunpack.c.l.s4 1983009808
    %v1239 = vunpack.c.0.s8 %v1238
    %v1240 = vlaneseq
    %v1241 = vshrl.u32 %v1240, 7
    %v1242 = vsub.s32 %v1239, %v1241
    %v1243 = vrot.slane %v1229, %v1242
    %v1244 = vcombine.high %v1236, %v1236
    %vm1248 = vcmask 254976
    %v1249 = vsel %vm1248, %v1236, 0.0
    %v1250 = vsel %vm1248, %v1244, 0.0
    %v1251 = vadd.f32 %v1249, %v1250
    %v1252 = vsel %vm1248, %v1243, 0.0
    %v1253 = vadd.f32 %v1251, %v1252
    %v1254 = vxor.u32 %v1253, 2147483648
    %v1255 = vmul.f32 %v1254, 1.442695
    %v1256 = vpow.pop %v1255
    %v1257 = vadd.f32 %v1256, 1.0
    %v1258 = vrcp.pop %v1257
    %v1259 = vmul.f32 1.0, %v1258
    %v1260 = vlaneseq
    %v1261 = vshrl.u32 %v1260, 7
    %v1262 = vsub.s32 0, %v1261
    %v1263 = vrot.slane %v1259, %v1262
    %1265 = vbcast.lane.b32.xlu0 %v1263, 256
    %v1266 = vpop.permute.xlu0 %1265
    %s1268 = sor.u32 256, 8
    %1269 = vbcast.lane.b32.xlu0 %v1263, %s1268
    %v1270 = vpop.permute.xlu0 %1269
    %s1272 = sor.u32 256, 16
    %1273 = vbcast.lane.b32.xlu0 %v1263, %s1272
    %v1274 = vpop.permute.xlu0 %1273
    %s1276 = sor.u32 256, 24
    %1277 = vbcast.lane.b32.xlu0 %v1263, %s1276
    %v1278 = vpop.permute.xlu0 %1277
    %v1279 = vlaneseq
    %v1280 = vshrl.u32 %v1279, 7
    %v1281 = vsub.s32 1, %v1280
    %v1282 = vrot.slane %v1259, %v1281
    %1284 = vbcast.lane.b32.xlu0 %v1282, 256
    %v1285 = vpop.permute.xlu0 %1284
    %s1287 = sor.u32 256, 8
    %1288 = vbcast.lane.b32.xlu0 %v1282, %s1287
    %v1289 = vpop.permute.xlu0 %1288
    %s1291 = sor.u32 256, 16
    %1292 = vbcast.lane.b32.xlu0 %v1282, %s1291
    %v1293 = vpop.permute.xlu0 %1292
    %s1295 = sor.u32 256, 24
    %1296 = vbcast.lane.b32.xlu0 %v1282, %s1295
    %v1297 = vpop.permute.xlu0 %1296
    %v1298 = vmul.f32 %v84, %v1266
    %v1299 = vmul.f32 %v85, %v1266
    %v1300 = vmul.f32 %v86, %v1270
    %v1301 = vmul.f32 %v87, %v1270
    %v1302 = vmul.f32 %v88, %v1274
    %v1303 = vmul.f32 %v89, %v1274
    %v1304 = vmul.f32 %v90, %v1278
    %v1305 = vmul.f32 %v91, %v1278
    %v1306 = vmul.f32 %v92, %v1285
    %v1307 = vmul.f32 %v93, %v1285
    %v1308 = vmul.f32 %v94, %v1289
    %v1309 = vmul.f32 %v95, %v1289
    %v1310 = vmul.f32 %v96, %v1293
    %v1311 = vmul.f32 %v97, %v1293
    %v1312 = vmul.f32 %v98, %v1297
    %v1313 = vmul.f32 %v99, %v1297
    %1314 = vst [vmem:[#allocation10] sm:$0xff] %v1298
    %1315 = vst [vmem:[#allocation10 + $0x8] sm:$0xff] %v1299
    %1316 = vst [vmem:[#allocation10 + $0x10] sm:$0xff] %v1300
    %1317 = vst [vmem:[#allocation10 + $0x18] sm:$0xff] %v1301
    %1318 = vst [vmem:[#allocation10 + $0x20] sm:$0xff] %v1302
    %1319 = vst [vmem:[#allocation10 + $0x28] sm:$0xff] %v1303
    %1320 = vst [vmem:[#allocation10 + $0x30] sm:$0xff] %v1304
    %1321 = vst [vmem:[#allocation10 + $0x38] sm:$0xff] %v1305
    %1322 = vst [vmem:[#allocation10 + $0x40] sm:$0xff] %v1306
    %1323 = vst [vmem:[#allocation10 + $0x48] sm:$0xff] %v1307
    %1324 = vst [vmem:[#allocation10 + $0x50] sm:$0xff] %v1308
    %1325 = vst [vmem:[#allocation10 + $0x58] sm:$0xff] %v1309
    %1326 = vst [vmem:[#allocation10 + $0x60] sm:$0xff] %v1310
    %1327 = vst [vmem:[#allocation10 + $0x68] sm:$0xff] %v1311
    %1328 = vst [vmem:[#allocation10 + $0x70] sm:$0xff] %v1312
    %1329 = vst [vmem:[#allocation10 + $0x78] sm:$0xff] %v1313
    // Predicated region
    $region42: #{tpu_custom_call.1} parent=1 // pred_check
      _
    $region43: #{tpu_custom_call.1} parent=1 // pred_check_branch
      %1331 = sbr.rel (0) target = $region45
    $region44: #{tpu_custom_call.1} parent=1 // pred_region
      %s1333 = ssub.s32 2048, 2048
      %1334 = vsyncadd [#allocation4], %s1333
      %s1335 = sshll.u32 [#allocation10], 4
      %s1336 = int_to_ptr.vmem [resolvable:$true] %s1335
      %1341 = dma.vmem_to_hbm [thread:$0]  %s1336, 2048, %s6, [#allocation4], 256, 256, 16
    $region45: #{tpu_custom_call.1} parent=1 // pred_fallthru
      _
    // Predicated region
    $region46: #{tpu_custom_call.1} parent=1 // pred_check
      _
    $region47: #{tpu_custom_call.1} parent=1 // pred_check_branch
      %1343 = sbr.rel (0) target = $region49
    $region48: #{tpu_custom_call.1} parent=1 // pred_region
      %1344 = dma.done [#allocation4], 2048
    $region49: #{tpu_custom_call.1} parent=1 // pred_fallthru
      _
    %1345 = vsyncpa [#allocation3], 1
    %1346 = vsyncpa [#allocation6], 1
    %1347 = vsyncpa [#allocation9], 1
    %1348 = vsyncpa [#allocation4], 1

</llo_original>
